<compile_context>
chip_gen: v5e
topology: v5e:2x2
jax: 0.10.0
libtpu: 0.0.40
codegen_flags: <defaults>
</compile_context>

<pallas_src>
import functools

import numpy as np

import jax
import jax.numpy as jnp
from jax.experimental import pallas as pl
from jax.experimental.pallas import tpu as pltpu


# ------------------------------ kernel helpers ------------------------------

def _bf16(x):
    return x.astype(jnp.bfloat16)


def _mm(a, w):
    """bf16 MXU inputs, f32 accumulation."""
    return jnp.dot(_bf16(a), w, preferred_element_type=jnp.float32)


def _ln(x, g, b, eps):
    """LayerNorm over the last (lane) axis, f32."""
    mu = jnp.mean(x, axis=-1, keepdims=True)
    xc = x - mu
    var = jnp.mean(xc * xc, axis=-1, keepdims=True)
    return xc * jax.lax.rsqrt(var + eps) * g + b


# --------------------------- whole-network kernel ----------------------------

def tinyvit_kernel(
    xp_ref,                                            # (B*N0, Cin*P*P) f32
    pe_w_ref, pe_b_ref, pe_g_ref, pe_bb_ref,           # patch embed
    mask_ref,                                          # (9, B*N0, 1) dwconv halo mask
    mb_w1_ref, mb_b1_ref, mb_dw_ref, mb_dwb_ref,       # MBConv (stacked over depth)
    mb_w2_ref, mb_b2_ref,
    gsel_ref, mg_g_ref, mg_w_ref, mg_b_ref,            # patch merging
    abias_ref,                                         # (B*N1, B*N1) block-diag attn mask
    ln1g_ref, ln1b_ref, qkvw_ref, qkvb_ref,            # transformer (stacked over depth)
    projw_ref, projb_ref, ls1_ref,
    ln2g_ref, ln2b_ref, m1w_ref, m1b_ref,
    m2w_ref, m2b_ref, ls2_ref,
    nrm_g_ref, nrm_b_ref, pool_ref, hw_ref, hb_ref,    # final norm / pool / head
    o_ref,                                             # (B, num_classes) f32
    *, d0, d1, num_heads, width, eps,
):
    # ---- PatchEmbed: im2col matmul + bias + LayerNorm -----------------------
    x = _mm(xp_ref[...], pe_w_ref[...]) + pe_b_ref[...]
    x = _ln(x, pe_g_ref[...], pe_bb_ref[...], eps)            # (B*N0, E0) f32
    ntok0 = x.shape[0]

    # ---- Stage 0: MBConv blocks (pw-expand+GELU -> dw3x3+GELU -> pw-proj + res)
    for d in range(d0):
        y = jax.nn.gelu(_mm(x, mb_w1_ref[d]) + mb_b1_ref[d], approximate=True)
        acc = jnp.zeros_like(y)
        k = 0
        for dy in (-1, 0, 1):
            for dx in (-1, 0, 1):
                s = dy * width + dx                            # token offset of this tap
                shifted = y if s == 0 else pltpu.roll(y, shift=(-s) % ntok0, axis=0)
                # mask zeroes taps that fall outside the image (incl. batch wrap)
                acc = acc + (shifted * mask_ref[k]) * mb_dw_ref[d * 9 + k]
                k += 1
        z = jax.nn.gelu(acc + mb_dwb_ref[d], approximate=True)
        x = x + _mm(z, mb_w2_ref[d]) + mb_b2_ref[d]

    # ---- PatchMerging: 2x2 concat via selection matmuls + decomposed LN + Linear
    pieces = [jnp.dot(gsel_ref[q], _bf16(x), preferred_element_type=jnp.float32)
              for q in range(4)]                               # 4 x (B*N1, E0)
    four_e0 = 4 * pieces[0].shape[1]
    s1 = sum(jnp.sum(t, axis=-1, keepdims=True) for t in pieces)
    s2 = sum(jnp.sum(t * t, axis=-1, keepdims=True) for t in pieces)
    mu = s1 / four_e0
    var = s2 / four_e0 - mu * mu
    rstd = jax.lax.rsqrt(var + eps)
    x = mg_b_ref[...] + sum(
        _mm(((pieces[q] - mu) * rstd) * mg_g_ref[q], mg_w_ref[q]) for q in range(4))
    # x: (B*N1, E1) f32

    # ---- Stage 1: Transformer blocks (block-diagonal attention over B*N1 tokens)
    dim = qkvw_ref.shape[1]
    dh = dim // num_heads
    scale = dh ** -0.5
    abias = abias_ref[...]
    for d in range(d1):
        y = _ln(x, ln1g_ref[d], ln1b_ref[d], eps)
        qkv = _mm(y, qkvw_ref[d]) + qkvb_ref[d]                # (B*N1, 3*dim)
        projw = projw_ref[d]
        attn = jnp.zeros_like(x)
        for h in range(num_heads):
            q = _bf16(qkv[:, h * dh:(h + 1) * dh])
            kk = _bf16(qkv[:, dim + h * dh:dim + (h + 1) * dh])
            v = _bf16(qkv[:, 2 * dim + h * dh:2 * dim + (h + 1) * dh])
            s = jax.lax.dot_general(q, kk, (((1,), (1,)), ((), ())),
                                    preferred_element_type=jnp.float32) * scale + abias
            s = s - jnp.max(s, axis=-1, keepdims=True)
            p = jnp.exp(s)
            p = p / jnp.sum(p, axis=-1, keepdims=True)         # exact softmax norm
            o = _mm(p, v)                                      # (B*N1, dh)
            # sum of per-head projection row-slices == concat(heads) @ proj_w
            attn = attn + _mm(o, projw[h * dh:(h + 1) * dh, :])
        x = x + ls1_ref[d] * (attn + projb_ref[d])             # layer-scale + residual

        y = _ln(x, ln2g_ref[d], ln2b_ref[d], eps)
        y = jax.nn.gelu(_mm(y, m1w_ref[d]) + m1b_ref[d], approximate=True)
        x = x + ls2_ref[d] * (_mm(y, m2w_ref[d]) + m2b_ref[d])

    # ---- Head: LayerNorm (per token) -> mean over tokens -> classifier ------
    # (matches the reference: self.norm(x) then x.mean(dim=1) then head)
    y = _ln(x, nrm_g_ref[...], nrm_b_ref[...], eps)
    pooled = jnp.dot(pool_ref[...], y, preferred_element_type=jnp.float32)   # (B, E1)
    o_ref[...] = (_mm(pooled, hw_ref[...]) + hb_ref[...]).astype(o_ref.dtype)


# ---------------------------- precomputed constants --------------------------

def _dwconv_mask(hp, wp, batch):
    """(9, B*N0, 1) 0/1 mask: tap k=(dy+1)*3+(dx+1) valid at token (i, j)."""
    n = hp * wp
    m = np.zeros((9, batch * n, 1), np.float32)
    k = 0
    for dy in (-1, 0, 1):
        for dx in (-1, 0, 1):
            for i in range(hp):
                for j in range(wp):
                    if 0 <= i + dy < hp and 0 <= j + dx < wp:
                        for b in range(batch):
                            m[k, b * n + i * wp + j, 0] = 1.0
            k += 1
    return jnp.asarray(m)


def _merge_select(hp, wp, batch):
    """(4, B*N1, B*N0) 0/1 selection matrices for the 2x2 patch-merge gather."""
    h1, w1 = hp // 2, wp // 2
    n0, n1 = hp * wp, h1 * w1
    g = np.zeros((4, batch * n1, batch * n0), np.float32)
    for q, (dy, dx) in enumerate(((0, 0), (1, 0), (0, 1), (1, 1))):
        for b in range(batch):
            for i in range(h1):
                for j in range(w1):
                    g[q, b * n1 + i * w1 + j,
                      b * n0 + (2 * i + dy) * wp + (2 * j + dx)] = 1.0
    return jnp.asarray(g, jnp.bfloat16)


def _block_diag_bias(batch, n1):
    """(B*N1, B*N1) additive attention mask: 0 within an image, -1e9 across images."""
    a = np.full((batch * n1, batch * n1), -1e9, np.float32)
    for b in range(batch):
        a[b * n1:(b + 1) * n1, b * n1:(b + 1) * n1] = 0.0
    return jnp.asarray(a)


def _pool_matrix(batch, n1):
    """(B, B*N1) token mean-pool matrix (1/N1 within each image block)."""
    p = np.zeros((batch, batch * n1), np.float32)
    for b in range(batch):
        p[b, b * n1:(b + 1) * n1] = 1.0 / n1
    return jnp.asarray(p)


# ------------------------------ parameter init -------------------------------

def init_params(key, cfg):
    E0, E1 = cfg["embed_dims"]
    r0, r1 = cfg["mlp_ratios"]
    Cin, P = cfg["in_channels"], cfg["patch_size"]
    D0, D1 = cfg["depths"]
    ls = cfg["layer_scale_init_value"]
    nc = cfg["num_classes"]
    hid0, hid1 = E0 * r0, E1 * r1
    keys = iter(jax.random.split(key, 32))

    def w(shape, dtype=jnp.bfloat16):       # matmul weights in bf16 (MXU inputs)
        v = 0.02 * jax.random.truncated_normal(next(keys), -2.0, 2.0, shape, jnp.float32)
        return v.astype(dtype)

    def zeros(*shape):
        return jnp.zeros(shape, jnp.float32)

    def ones(*shape):
        return jnp.ones(shape, jnp.float32)

    return dict(
        pe_w=w((Cin * P * P, E0)), pe_b=zeros(1, E0),
        pe_g=ones(1, E0), pe_bb=zeros(1, E0),
        # MBConv weights stacked over depth
        mb_w1=w((D0, E0, hid0)), mb_b1=zeros(D0, 1, hid0),
        mb_dw=w((D0 * 9, 1, hid0), jnp.float32), mb_dwb=zeros(D0, 1, hid0),
        mb_w2=w((D0, hid0, E0)), mb_b2=zeros(D0, 1, E0),
        # PatchMerging
        mg_g=ones(4, 1, E0), mg_lnb=zeros(1, 4 * E0),
        mg_w=w((4 * E0, E1)), mg_b=zeros(1, E1),
        # Transformer weights stacked over depth
        ln1g=ones(D1, 1, E1), ln1b=zeros(D1, 1, E1),
        qkvw=w((D1, E1, 3 * E1)), qkvb=zeros(D1, 1, 3 * E1),
        projw=w((D1, E1, E1)), projb=zeros(D1, 1, E1),
        ls1=jnp.full((D1, 1, E1), ls, jnp.float32),
        ln2g=ones(D1, 1, E1), ln2b=zeros(D1, 1, E1),
        m1w=w((D1, E1, hid1)), m1b=zeros(D1, 1, hid1),
        m2w=w((D1, hid1, E1)), m2b=zeros(D1, 1, E1),
        ls2=jnp.full((D1, 1, E1), ls, jnp.float32),
        # final norm + head
        nrm_g=ones(1, E1), nrm_b=zeros(1, E1),
        head_w=w((E1, nc)), head_b=zeros(1, nc),
    )


# ------------------------------- forward pass --------------------------------

def tinyvit_forward(params, x_nchw, cfg):
    B, Cin, H, W = x_nchw.shape
    P = cfg["patch_size"]
    E0, E1 = cfg["embed_dims"]
    D0, D1 = cfg["depths"]
    nc = cfg["num_classes"]
    Hp, Wp = H // P, W // P
    N0 = Hp * Wp
    N1 = (Hp // 2) * (Wp // 2)
    eps = 1e-5

    # im2col patchify (tiny one-shot XLA layout op on the raw input).
    xp = (x_nchw.reshape(B, Cin, Hp, P, Wp, P)
          .transpose(0, 2, 4, 1, 3, 5)
          .reshape(B * N0, Cin * P * P))

    # Split the merge linear weight per quadrant and fold LN bias into the bias.
    mg_w4 = params["mg_w"].reshape(4, E0, E1)
    mg_bias = params["mg_lnb"] @ params["mg_w"].astype(jnp.float32) + params["mg_b"]

    inputs = [
        xp,
        params["pe_w"], params["pe_b"], params["pe_g"], params["pe_bb"],
        _dwconv_mask(Hp, Wp, B),
        params["mb_w1"], params["mb_b1"], params["mb_dw"], params["mb_dwb"],
        params["mb_w2"], params["mb_b2"],
        _merge_select(Hp, Wp, B), params["mg_g"], mg_w4, mg_bias,
        _block_diag_bias(B, N1),
        params["ln1g"], params["ln1b"], params["qkvw"], params["qkvb"],
        params["projw"], params["projb"], params["ls1"],
        params["ln2g"], params["ln2b"], params["m1w"], params["m1b"],
        params["m2w"], params["m2b"], params["ls2"],
        params["nrm_g"], params["nrm_b"], _pool_matrix(B, N1),
        params["head_w"], params["head_b"],
    ]

    kernel = functools.partial(
        tinyvit_kernel, d0=D0, d1=D1, num_heads=cfg["num_heads"][1], width=Wp, eps=eps)

    # Single launch, no grid: every operand is one whole-array VMEM block.
    return pl.pallas_call(
        kernel,
        out_shape=jax.ShapeDtypeStruct((B, nc), jnp.float32),
        compiler_params=pltpu.CompilerParams(vmem_limit_bytes=32 * 1024 * 1024),
    )(*inputs)


# ----------------------------------- main ------------------------------------

if __name__ == "__main__":
    cfg = dict(
        img_size=16, in_channels=4, num_classes=8,
        embed_dims=[8, 16], depths=[1, 1], num_heads=[2, 2],
        mlp_ratios=[2, 2], patch_size=4, layer_scale_init_value=1e-5,
    )
    key = jax.random.PRNGKey(0)
    kp, kx = jax.random.split(key)
    params = init_params(kp, cfg)
    x = jax.random.normal(
        kx, (2, cfg["in_channels"], cfg["img_size"], cfg["img_size"]), dtype=jnp.float32)

    fwd = jax.jit(functools.partial(tinyvit_forward, cfg=cfg))
    out = jax.block_until_ready(fwd(params, x))
    assert out.shape == (2, cfg["num_classes"]) and out.dtype == jnp.float32
    print("KERNEL_OK")
</pallas_src>

<mosaic_0001>
module attributes {stable_mosaic.version = 11 : i64} {
  func.func @tinyvit_kernel(%arg0: memref<32x64xf32, #tpu.memory_space<vmem>>, %arg1: memref<64x8xbf16, #tpu.memory_space<vmem>>, %arg2: memref<1x8xf32, #tpu.memory_space<vmem>>, %arg3: memref<1x8xf32, #tpu.memory_space<vmem>>, %arg4: memref<1x8xf32, #tpu.memory_space<vmem>>, %arg5: memref<9x32x1xf32, #tpu.memory_space<vmem>>, %arg6: memref<1x8x16xbf16, #tpu.memory_space<vmem>>, %arg7: memref<1x1x16xf32, #tpu.memory_space<vmem>>, %arg8: memref<9x1x16xf32, #tpu.memory_space<vmem>>, %arg9: memref<1x1x16xf32, #tpu.memory_space<vmem>>, %arg10: memref<1x16x8xbf16, #tpu.memory_space<vmem>>, %arg11: memref<1x1x8xf32, #tpu.memory_space<vmem>>, %arg12: memref<4x8x32xbf16, #tpu.memory_space<vmem>>, %arg13: memref<4x1x8xf32, #tpu.memory_space<vmem>>, %arg14: memref<4x8x16xbf16, #tpu.memory_space<vmem>>, %arg15: memref<1x16xf32, #tpu.memory_space<vmem>>, %arg16: memref<8x8xf32, #tpu.memory_space<vmem>>, %arg17: memref<1x1x16xf32, #tpu.memory_space<vmem>>, %arg18: memref<1x1x16xf32, #tpu.memory_space<vmem>>, %arg19: memref<1x16x48xbf16, #tpu.memory_space<vmem>>, %arg20: memref<1x1x48xf32, #tpu.memory_space<vmem>>, %arg21: memref<1x16x16xbf16, #tpu.memory_space<vmem>>, %arg22: memref<1x1x16xf32, #tpu.memory_space<vmem>>, %arg23: memref<1x1x16xf32, #tpu.memory_space<vmem>>, %arg24: memref<1x1x16xf32, #tpu.memory_space<vmem>>, %arg25: memref<1x1x16xf32, #tpu.memory_space<vmem>>, %arg26: memref<1x16x32xbf16, #tpu.memory_space<vmem>>, %arg27: memref<1x1x32xf32, #tpu.memory_space<vmem>>, %arg28: memref<1x32x16xbf16, #tpu.memory_space<vmem>>, %arg29: memref<1x1x16xf32, #tpu.memory_space<vmem>>, %arg30: memref<1x1x16xf32, #tpu.memory_space<vmem>>, %arg31: memref<1x16xf32, #tpu.memory_space<vmem>>, %arg32: memref<1x16xf32, #tpu.memory_space<vmem>>, %arg33: memref<2x8xf32, #tpu.memory_space<vmem>>, %arg34: memref<16x8xbf16, #tpu.memory_space<vmem>>, %arg35: memref<1x8xf32, #tpu.memory_space<vmem>>, %arg36: memref<2x8xf32, #tpu.memory_space<vmem>>) attributes {dimension_semantics = [], scalar_prefetch = 0 : i64, scratch_operands = 0 : i64, tpu.core_type = #tpu.core_type<tc>} {
    %c0 = arith.constant 0 : index
    %c0_0 = arith.constant 0 : index
    %0 = vector.load %arg0[%c0, %c0_0] : memref<32x64xf32, #tpu.memory_space<vmem>>, vector<32x64xf32>
    %c0_1 = arith.constant 0 : index
    %c0_2 = arith.constant 0 : index
    %1 = vector.load %arg1[%c0_1, %c0_2] : memref<64x8xbf16, #tpu.memory_space<vmem>>, vector<64x8xbf16>
    %2 = arith.truncf %0 : vector<32x64xf32> to vector<32x64xbf16>
    %cst = arith.constant dense<0.000000e+00> : vector<32x8xf32>
    %3 = tpu.matmul %2, %1, %cst {dimension_numbers = #tpu.dot_dimension_numbers<[1], [0], [0], [1], [0, 0, 1, 1], [], []>} : vector<32x64xbf16>, vector<64x8xbf16>, vector<32x8xf32> -> vector<32x8xf32>
    %c0_3 = arith.constant 0 : index
    %c0_4 = arith.constant 0 : index
    %4 = vector.load %arg2[%c0_3, %c0_4] : memref<1x8xf32, #tpu.memory_space<vmem>>, vector<1x8xf32>
    %5 = vector.broadcast %4 : vector<1x8xf32> to vector<32x8xf32>
    %6 = arith.addf %3, %5 : vector<32x8xf32>
    %c0_5 = arith.constant 0 : index
    %c0_6 = arith.constant 0 : index
    %7 = vector.load %arg3[%c0_5, %c0_6] : memref<1x8xf32, #tpu.memory_space<vmem>>, vector<1x8xf32>
    %c0_7 = arith.constant 0 : index
    %c0_8 = arith.constant 0 : index
    %8 = vector.load %arg4[%c0_7, %c0_8] : memref<1x8xf32, #tpu.memory_space<vmem>>, vector<1x8xf32>
    %cst_9 = arith.constant dense<0.000000e+00> : vector<32xf32>
    %9 = vector.multi_reduction <add>, %6, %cst_9 [1] : vector<32x8xf32> to vector<32xf32>
    %10 = vector.shape_cast %9 : vector<32xf32> to vector<32x1xf32>
    %cst_10 = arith.constant 8.000000e+00 : f32
    %11 = vector.broadcast %cst_10 : f32 to vector<32x1xf32>
    %12 = arith.divf %10, %11 : vector<32x1xf32>
    %13 = vector.broadcast %12 : vector<32x1xf32> to vector<32x8xf32>
    %14 = arith.subf %6, %13 : vector<32x8xf32>
    %15 = arith.mulf %14, %14 : vector<32x8xf32>
    %cst_11 = arith.constant dense<0.000000e+00> : vector<32xf32>
    %16 = vector.multi_reduction <add>, %15, %cst_11 [1] : vector<32x8xf32> to vector<32xf32>
    %17 = vector.shape_cast %16 : vector<32xf32> to vector<32x1xf32>
    %cst_12 = arith.constant 8.000000e+00 : f32
    %18 = vector.broadcast %cst_12 : f32 to vector<32x1xf32>
    %19 = arith.divf %17, %18 : vector<32x1xf32>
    %cst_13 = arith.constant 9.99999974E-6 : f32
    %20 = vector.broadcast %cst_13 : f32 to vector<32x1xf32>
    %21 = arith.addf %19, %20 : vector<32x1xf32>
    %22 = math.rsqrt %21 : vector<32x1xf32>
    %23 = vector.broadcast %22 : vector<32x1xf32> to vector<32x8xf32>
    %24 = arith.mulf %14, %23 : vector<32x8xf32>
    %25 = vector.broadcast %7 : vector<1x8xf32> to vector<32x8xf32>
    %26 = arith.mulf %24, %25 : vector<32x8xf32>
    %27 = vector.broadcast %8 : vector<1x8xf32> to vector<32x8xf32>
    %28 = arith.addf %26, %27 : vector<32x8xf32>
    %c0_14 = arith.constant 0 : index
    %c0_15 = arith.constant 0 : index
    %c0_16 = arith.constant 0 : index
    %29 = vector.load %arg6[%c0_14, %c0_15, %c0_16] : memref<1x8x16xbf16, #tpu.memory_space<vmem>>, vector<1x8x16xbf16>
    %30 = vector.shape_cast %29 : vector<1x8x16xbf16> to vector<8x16xbf16>
    %31 = arith.truncf %28 : vector<32x8xf32> to vector<32x8xbf16>
    %cst_17 = arith.constant dense<0.000000e+00> : vector<32x16xf32>
    %32 = tpu.matmul %31, %30, %cst_17 {dimension_numbers = #tpu.dot_dimension_numbers<[1], [0], [0], [1], [0, 0, 1, 1], [], []>} : vector<32x8xbf16>, vector<8x16xbf16>, vector<32x16xf32> -> vector<32x16xf32>
    %c0_18 = arith.constant 0 : index
    %c0_19 = arith.constant 0 : index
    %c0_20 = arith.constant 0 : index
    %33 = vector.load %arg7[%c0_18, %c0_19, %c0_20] : memref<1x1x16xf32, #tpu.memory_space<vmem>>, vector<1x1x16xf32>
    %34 = vector.shape_cast %33 : vector<1x1x16xf32> to vector<1x16xf32>
    %35 = vector.broadcast %34 : vector<1x16xf32> to vector<32x16xf32>
    %36 = arith.addf %32, %35 : vector<32x16xf32>
    %37 = arith.mulf %36, %36 : vector<32x16xf32>
    %38 = arith.mulf %36, %37 : vector<32x16xf32>
    %cst_21 = arith.constant 4.471500e-02 : f32
    %39 = vector.broadcast %cst_21 : f32 to vector<32x16xf32>
    %40 = arith.mulf %39, %38 : vector<32x16xf32>
    %41 = arith.addf %36, %40 : vector<32x16xf32>
    %cst_22 = arith.constant 0.797884583 : f32
    %42 = vector.broadcast %cst_22 : f32 to vector<32x16xf32>
    %43 = arith.mulf %42, %41 : vector<32x16xf32>
    %44 = math.tanh %43 : vector<32x16xf32>
    %cst_23 = arith.constant 1.000000e+00 : f32
    %45 = vector.broadcast %cst_23 : f32 to vector<32x16xf32>
    %46 = arith.addf %45, %44 : vector<32x16xf32>
    %cst_24 = arith.constant 5.000000e-01 : f32
    %47 = vector.broadcast %cst_24 : f32 to vector<32x16xf32>
    %48 = arith.mulf %47, %46 : vector<32x16xf32>
    %49 = arith.mulf %36, %48 : vector<32x16xf32>
    %cst_25 = arith.constant 0.000000e+00 : f32
    %50 = vector.broadcast %cst_25 : f32 to vector<32x16xf32>
    %c5_i32 = arith.constant 5 : i32
    %51 = tpu.dynamic_rotate %49 by %c5_i32 dim 0 : vector<32x16xf32>, i32 -> vector<32x16xf32>
    %c0_26 = arith.constant 0 : index
    %c0_27 = arith.constant 0 : index
    %c0_28 = arith.constant 0 : index
    %52 = vector.load %arg5[%c0_26, %c0_27, %c0_28] : memref<9x32x1xf32, #tpu.memory_space<vmem>>, vector<1x32x1xf32>
    %53 = vector.shape_cast %52 : vector<1x32x1xf32> to vector<32x1xf32>
    %54 = vector.broadcast %53 : vector<32x1xf32> to vector<32x16xf32>
    %55 = arith.mulf %51, %54 : vector<32x16xf32>
    %c0_29 = arith.constant 0 : index
    %c0_30 = arith.constant 0 : index
    %c0_31 = arith.constant 0 : index
    %56 = vector.load %arg8[%c0_29, %c0_30, %c0_31] : memref<9x1x16xf32, #tpu.memory_space<vmem>>, vector<1x1x16xf32>
    %57 = vector.shape_cast %56 : vector<1x1x16xf32> to vector<1x16xf32>
    %58 = vector.broadcast %57 : vector<1x16xf32> to vector<32x16xf32>
    %59 = arith.mulf %55, %58 : vector<32x16xf32>
    %60 = arith.addf %50, %59 : vector<32x16xf32>
    %c4_i32 = arith.constant 4 : i32
    %61 = tpu.dynamic_rotate %49 by %c4_i32 dim 0 : vector<32x16xf32>, i32 -> vector<32x16xf32>
    %c1 = arith.constant 1 : index
    %c0_32 = arith.constant 0 : index
    %c0_33 = arith.constant 0 : index
    %62 = vector.load %arg5[%c1, %c0_32, %c0_33] : memref<9x32x1xf32, #tpu.memory_space<vmem>>, vector<1x32x1xf32>
    %63 = vector.shape_cast %62 : vector<1x32x1xf32> to vector<32x1xf32>
    %64 = vector.broadcast %63 : vector<32x1xf32> to vector<32x16xf32>
    %65 = arith.mulf %61, %64 : vector<32x16xf32>
    %c1_34 = arith.constant 1 : index
    %c0_35 = arith.constant 0 : index
    %c0_36 = arith.constant 0 : index
    %66 = vector.load %arg8[%c1_34, %c0_35, %c0_36] : memref<9x1x16xf32, #tpu.memory_space<vmem>>, vector<1x1x16xf32>
    %67 = vector.shape_cast %66 : vector<1x1x16xf32> to vector<1x16xf32>
    %68 = vector.broadcast %67 : vector<1x16xf32> to vector<32x16xf32>
    %69 = arith.mulf %65, %68 : vector<32x16xf32>
    %70 = arith.addf %60, %69 : vector<32x16xf32>
    %c3_i32 = arith.constant 3 : i32
    %71 = tpu.dynamic_rotate %49 by %c3_i32 dim 0 : vector<32x16xf32>, i32 -> vector<32x16xf32>
    %c2 = arith.constant 2 : index
    %c0_37 = arith.constant 0 : index
    %c0_38 = arith.constant 0 : index
    %72 = vector.load %arg5[%c2, %c0_37, %c0_38] : memref<9x32x1xf32, #tpu.memory_space<vmem>>, vector<1x32x1xf32>
    %73 = vector.shape_cast %72 : vector<1x32x1xf32> to vector<32x1xf32>
    %74 = vector.broadcast %73 : vector<32x1xf32> to vector<32x16xf32>
    %75 = arith.mulf %71, %74 : vector<32x16xf32>
    %c2_39 = arith.constant 2 : index
    %c0_40 = arith.constant 0 : index
    %c0_41 = arith.constant 0 : index
    %76 = vector.load %arg8[%c2_39, %c0_40, %c0_41] : memref<9x1x16xf32, #tpu.memory_space<vmem>>, vector<1x1x16xf32>
    %77 = vector.shape_cast %76 : vector<1x1x16xf32> to vector<1x16xf32>
    %78 = vector.broadcast %77 : vector<1x16xf32> to vector<32x16xf32>
    %79 = arith.mulf %75, %78 : vector<32x16xf32>
    %80 = arith.addf %70, %79 : vector<32x16xf32>
    %c1_i32 = arith.constant 1 : i32
    %81 = tpu.dynamic_rotate %49 by %c1_i32 dim 0 : vector<32x16xf32>, i32 -> vector<32x16xf32>
    %c3 = arith.constant 3 : index
    %c0_42 = arith.constant 0 : index
    %c0_43 = arith.constant 0 : index
    %82 = vector.load %arg5[%c3, %c0_42, %c0_43] : memref<9x32x1xf32, #tpu.memory_space<vmem>>, vector<1x32x1xf32>
    %83 = vector.shape_cast %82 : vector<1x32x1xf32> to vector<32x1xf32>
    %84 = vector.broadcast %83 : vector<32x1xf32> to vector<32x16xf32>
    %85 = arith.mulf %81, %84 : vector<32x16xf32>
    %c3_44 = arith.constant 3 : index
    %c0_45 = arith.constant 0 : index
    %c0_46 = arith.constant 0 : index
    %86 = vector.load %arg8[%c3_44, %c0_45, %c0_46] : memref<9x1x16xf32, #tpu.memory_space<vmem>>, vector<1x1x16xf32>
    %87 = vector.shape_cast %86 : vector<1x1x16xf32> to vector<1x16xf32>
    %88 = vector.broadcast %87 : vector<1x16xf32> to vector<32x16xf32>
    %89 = arith.mulf %85, %88 : vector<32x16xf32>
    %90 = arith.addf %80, %89 : vector<32x16xf32>
    %c4 = arith.constant 4 : index
    %c0_47 = arith.constant 0 : index
    %c0_48 = arith.constant 0 : index
    %91 = vector.load %arg5[%c4, %c0_47, %c0_48] : memref<9x32x1xf32, #tpu.memory_space<vmem>>, vector<1x32x1xf32>
    %92 = vector.shape_cast %91 : vector<1x32x1xf32> to vector<32x1xf32>
    %93 = vector.broadcast %92 : vector<32x1xf32> to vector<32x16xf32>
    %94 = arith.mulf %49, %93 : vector<32x16xf32>
    %c4_49 = arith.constant 4 : index
    %c0_50 = arith.constant 0 : index
    %c0_51 = arith.constant 0 : index
    %95 = vector.load %arg8[%c4_49, %c0_50, %c0_51] : memref<9x1x16xf32, #tpu.memory_space<vmem>>, vector<1x1x16xf32>
    %96 = vector.shape_cast %95 : vector<1x1x16xf32> to vector<1x16xf32>
    %97 = vector.broadcast %96 : vector<1x16xf32> to vector<32x16xf32>
    %98 = arith.mulf %94, %97 : vector<32x16xf32>
    %99 = arith.addf %90, %98 : vector<32x16xf32>
    %c31_i32 = arith.constant 31 : i32
    %100 = tpu.dynamic_rotate %49 by %c31_i32 dim 0 : vector<32x16xf32>, i32 -> vector<32x16xf32>
    %c5 = arith.constant 5 : index
    %c0_52 = arith.constant 0 : index
    %c0_53 = arith.constant 0 : index
    %101 = vector.load %arg5[%c5, %c0_52, %c0_53] : memref<9x32x1xf32, #tpu.memory_space<vmem>>, vector<1x32x1xf32>
    %102 = vector.shape_cast %101 : vector<1x32x1xf32> to vector<32x1xf32>
    %103 = vector.broadcast %102 : vector<32x1xf32> to vector<32x16xf32>
    %104 = arith.mulf %100, %103 : vector<32x16xf32>
    %c5_54 = arith.constant 5 : index
    %c0_55 = arith.constant 0 : index
    %c0_56 = arith.constant 0 : index
    %105 = vector.load %arg8[%c5_54, %c0_55, %c0_56] : memref<9x1x16xf32, #tpu.memory_space<vmem>>, vector<1x1x16xf32>
    %106 = vector.shape_cast %105 : vector<1x1x16xf32> to vector<1x16xf32>
    %107 = vector.broadcast %106 : vector<1x16xf32> to vector<32x16xf32>
    %108 = arith.mulf %104, %107 : vector<32x16xf32>
    %109 = arith.addf %99, %108 : vector<32x16xf32>
    %c29_i32 = arith.constant 29 : i32
    %110 = tpu.dynamic_rotate %49 by %c29_i32 dim 0 : vector<32x16xf32>, i32 -> vector<32x16xf32>
    %c6 = arith.constant 6 : index
    %c0_57 = arith.constant 0 : index
    %c0_58 = arith.constant 0 : index
    %111 = vector.load %arg5[%c6, %c0_57, %c0_58] : memref<9x32x1xf32, #tpu.memory_space<vmem>>, vector<1x32x1xf32>
    %112 = vector.shape_cast %111 : vector<1x32x1xf32> to vector<32x1xf32>
    %113 = vector.broadcast %112 : vector<32x1xf32> to vector<32x16xf32>
    %114 = arith.mulf %110, %113 : vector<32x16xf32>
    %c6_59 = arith.constant 6 : index
    %c0_60 = arith.constant 0 : index
    %c0_61 = arith.constant 0 : index
    %115 = vector.load %arg8[%c6_59, %c0_60, %c0_61] : memref<9x1x16xf32, #tpu.memory_space<vmem>>, vector<1x1x16xf32>
    %116 = vector.shape_cast %115 : vector<1x1x16xf32> to vector<1x16xf32>
    %117 = vector.broadcast %116 : vector<1x16xf32> to vector<32x16xf32>
    %118 = arith.mulf %114, %117 : vector<32x16xf32>
    %119 = arith.addf %109, %118 : vector<32x16xf32>
    %c28_i32 = arith.constant 28 : i32
    %120 = tpu.dynamic_rotate %49 by %c28_i32 dim 0 : vector<32x16xf32>, i32 -> vector<32x16xf32>
    %c7 = arith.constant 7 : index
    %c0_62 = arith.constant 0 : index
    %c0_63 = arith.constant 0 : index
    %121 = vector.load %arg5[%c7, %c0_62, %c0_63] : memref<9x32x1xf32, #tpu.memory_space<vmem>>, vector<1x32x1xf32>
    %122 = vector.shape_cast %121 : vector<1x32x1xf32> to vector<32x1xf32>
    %123 = vector.broadcast %122 : vector<32x1xf32> to vector<32x16xf32>
    %124 = arith.mulf %120, %123 : vector<32x16xf32>
    %c7_64 = arith.constant 7 : index
    %c0_65 = arith.constant 0 : index
    %c0_66 = arith.constant 0 : index
    %125 = vector.load %arg8[%c7_64, %c0_65, %c0_66] : memref<9x1x16xf32, #tpu.memory_space<vmem>>, vector<1x1x16xf32>
    %126 = vector.shape_cast %125 : vector<1x1x16xf32> to vector<1x16xf32>
    %127 = vector.broadcast %126 : vector<1x16xf32> to vector<32x16xf32>
    %128 = arith.mulf %124, %127 : vector<32x16xf32>
    %129 = arith.addf %119, %128 : vector<32x16xf32>
    %c27_i32 = arith.constant 27 : i32
    %130 = tpu.dynamic_rotate %49 by %c27_i32 dim 0 : vector<32x16xf32>, i32 -> vector<32x16xf32>
    %c8 = arith.constant 8 : index
    %c0_67 = arith.constant 0 : index
    %c0_68 = arith.constant 0 : index
    %131 = vector.load %arg5[%c8, %c0_67, %c0_68] : memref<9x32x1xf32, #tpu.memory_space<vmem>>, vector<1x32x1xf32>
    %132 = vector.shape_cast %131 : vector<1x32x1xf32> to vector<32x1xf32>
    %133 = vector.broadcast %132 : vector<32x1xf32> to vector<32x16xf32>
    %134 = arith.mulf %130, %133 : vector<32x16xf32>
    %c8_69 = arith.constant 8 : index
    %c0_70 = arith.constant 0 : index
    %c0_71 = arith.constant 0 : index
    %135 = vector.load %arg8[%c8_69, %c0_70, %c0_71] : memref<9x1x16xf32, #tpu.memory_space<vmem>>, vector<1x1x16xf32>
    %136 = vector.shape_cast %135 : vector<1x1x16xf32> to vector<1x16xf32>
    %137 = vector.broadcast %136 : vector<1x16xf32> to vector<32x16xf32>
    %138 = arith.mulf %134, %137 : vector<32x16xf32>
    %139 = arith.addf %129, %138 : vector<32x16xf32>
    %c0_72 = arith.constant 0 : index
    %c0_73 = arith.constant 0 : index
    %c0_74 = arith.constant 0 : index
    %140 = vector.load %arg9[%c0_72, %c0_73, %c0_74] : memref<1x1x16xf32, #tpu.memory_space<vmem>>, vector<1x1x16xf32>
    %141 = vector.shape_cast %140 : vector<1x1x16xf32> to vector<1x16xf32>
    %142 = vector.broadcast %141 : vector<1x16xf32> to vector<32x16xf32>
    %143 = arith.addf %139, %142 : vector<32x16xf32>
    %144 = arith.mulf %143, %143 : vector<32x16xf32>
    %145 = arith.mulf %143, %144 : vector<32x16xf32>
    %cst_75 = arith.constant 4.471500e-02 : f32
    %146 = vector.broadcast %cst_75 : f32 to vector<32x16xf32>
    %147 = arith.mulf %146, %145 : vector<32x16xf32>
    %148 = arith.addf %143, %147 : vector<32x16xf32>
    %cst_76 = arith.constant 0.797884583 : f32
    %149 = vector.broadcast %cst_76 : f32 to vector<32x16xf32>
    %150 = arith.mulf %149, %148 : vector<32x16xf32>
    %151 = math.tanh %150 : vector<32x16xf32>
    %cst_77 = arith.constant 1.000000e+00 : f32
    %152 = vector.broadcast %cst_77 : f32 to vector<32x16xf32>
    %153 = arith.addf %152, %151 : vector<32x16xf32>
    %cst_78 = arith.constant 5.000000e-01 : f32
    %154 = vector.broadcast %cst_78 : f32 to vector<32x16xf32>
    %155 = arith.mulf %154, %153 : vector<32x16xf32>
    %156 = arith.mulf %143, %155 : vector<32x16xf32>
    %c0_79 = arith.constant 0 : index
    %c0_80 = arith.constant 0 : index
    %c0_81 = arith.constant 0 : index
    %157 = vector.load %arg10[%c0_79, %c0_80, %c0_81] : memref<1x16x8xbf16, #tpu.memory_space<vmem>>, vector<1x16x8xbf16>
    %158 = vector.shape_cast %157 : vector<1x16x8xbf16> to vector<16x8xbf16>
    %159 = arith.truncf %156 : vector<32x16xf32> to vector<32x16xbf16>
    %cst_82 = arith.constant dense<0.000000e+00> : vector<32x8xf32>
    %160 = tpu.matmul %159, %158, %cst_82 {dimension_numbers = #tpu.dot_dimension_numbers<[1], [0], [0], [1], [0, 0, 1, 1], [], []>} : vector<32x16xbf16>, vector<16x8xbf16>, vector<32x8xf32> -> vector<32x8xf32>
    %161 = arith.addf %28, %160 : vector<32x8xf32>
    %c0_83 = arith.constant 0 : index
    %c0_84 = arith.constant 0 : index
    %c0_85 = arith.constant 0 : index
    %162 = vector.load %arg11[%c0_83, %c0_84, %c0_85] : memref<1x1x8xf32, #tpu.memory_space<vmem>>, vector<1x1x8xf32>
    %163 = vector.shape_cast %162 : vector<1x1x8xf32> to vector<1x8xf32>
    %164 = vector.broadcast %163 : vector<1x8xf32> to vector<32x8xf32>
    %165 = arith.addf %161, %164 : vector<32x8xf32>
    %c0_86 = arith.constant 0 : index
    %c0_87 = arith.constant 0 : index
    %c0_88 = arith.constant 0 : index
    %166 = vector.load %arg12[%c0_86, %c0_87, %c0_88] : memref<4x8x32xbf16, #tpu.memory_space<vmem>>, vector<1x8x32xbf16>
    %167 = vector.shape_cast %166 : vector<1x8x32xbf16> to vector<8x32xbf16>
    %168 = arith.truncf %165 : vector<32x8xf32> to vector<32x8xbf16>
    %cst_89 = arith.constant dense<0.000000e+00> : vector<8x8xf32>
    %169 = tpu.matmul %167, %168, %cst_89 {dimension_numbers = #tpu.dot_dimension_numbers<[1], [0], [0], [1], [0, 0, 1, 1], [], []>} : vector<8x32xbf16>, vector<32x8xbf16>, vector<8x8xf32> -> vector<8x8xf32>
    %c1_90 = arith.constant 1 : index
    %c0_91 = arith.constant 0 : index
    %c0_92 = arith.constant 0 : index
    %170 = vector.load %arg12[%c1_90, %c0_91, %c0_92] : memref<4x8x32xbf16, #tpu.memory_space<vmem>>, vector<1x8x32xbf16>
    %171 = vector.shape_cast %170 : vector<1x8x32xbf16> to vector<8x32xbf16>
    %172 = arith.truncf %165 : vector<32x8xf32> to vector<32x8xbf16>
    %cst_93 = arith.constant dense<0.000000e+00> : vector<8x8xf32>
    %173 = tpu.matmul %171, %172, %cst_93 {dimension_numbers = #tpu.dot_dimension_numbers<[1], [0], [0], [1], [0, 0, 1, 1], [], []>} : vector<8x32xbf16>, vector<32x8xbf16>, vector<8x8xf32> -> vector<8x8xf32>
    %c2_94 = arith.constant 2 : index
    %c0_95 = arith.constant 0 : index
    %c0_96 = arith.constant 0 : index
    %174 = vector.load %arg12[%c2_94, %c0_95, %c0_96] : memref<4x8x32xbf16, #tpu.memory_space<vmem>>, vector<1x8x32xbf16>
    %175 = vector.shape_cast %174 : vector<1x8x32xbf16> to vector<8x32xbf16>
    %176 = arith.truncf %165 : vector<32x8xf32> to vector<32x8xbf16>
    %cst_97 = arith.constant dense<0.000000e+00> : vector<8x8xf32>
    %177 = tpu.matmul %175, %176, %cst_97 {dimension_numbers = #tpu.dot_dimension_numbers<[1], [0], [0], [1], [0, 0, 1, 1], [], []>} : vector<8x32xbf16>, vector<32x8xbf16>, vector<8x8xf32> -> vector<8x8xf32>
    %c3_98 = arith.constant 3 : index
    %c0_99 = arith.constant 0 : index
    %c0_100 = arith.constant 0 : index
    %178 = vector.load %arg12[%c3_98, %c0_99, %c0_100] : memref<4x8x32xbf16, #tpu.memory_space<vmem>>, vector<1x8x32xbf16>
    %179 = vector.shape_cast %178 : vector<1x8x32xbf16> to vector<8x32xbf16>
    %180 = arith.truncf %165 : vector<32x8xf32> to vector<32x8xbf16>
    %cst_101 = arith.constant dense<0.000000e+00> : vector<8x8xf32>
    %181 = tpu.matmul %179, %180, %cst_101 {dimension_numbers = #tpu.dot_dimension_numbers<[1], [0], [0], [1], [0, 0, 1, 1], [], []>} : vector<8x32xbf16>, vector<32x8xbf16>, vector<8x8xf32> -> vector<8x8xf32>
    %cst_102 = arith.constant dense<0.000000e+00> : vector<8xf32>
    %182 = vector.multi_reduction <add>, %169, %cst_102 [1] : vector<8x8xf32> to vector<8xf32>
    %183 = vector.shape_cast %182 : vector<8xf32> to vector<8x1xf32>
    %cst_103 = arith.constant 0.000000e+00 : f32
    %184 = vector.broadcast %cst_103 : f32 to vector<8x1xf32>
    %185 = arith.addf %184, %183 : vector<8x1xf32>
    %cst_104 = arith.constant dense<0.000000e+00> : vector<8xf32>
    %186 = vector.multi_reduction <add>, %173, %cst_104 [1] : vector<8x8xf32> to vector<8xf32>
    %187 = vector.shape_cast %186 : vector<8xf32> to vector<8x1xf32>
    %188 = arith.addf %185, %187 : vector<8x1xf32>
    %cst_105 = arith.constant dense<0.000000e+00> : vector<8xf32>
    %189 = vector.multi_reduction <add>, %177, %cst_105 [1] : vector<8x8xf32> to vector<8xf32>
    %190 = vector.shape_cast %189 : vector<8xf32> to vector<8x1xf32>
    %191 = arith.addf %188, %190 : vector<8x1xf32>
    %cst_106 = arith.constant dense<0.000000e+00> : vector<8xf32>
    %192 = vector.multi_reduction <add>, %181, %cst_106 [1] : vector<8x8xf32> to vector<8xf32>
    %193 = vector.shape_cast %192 : vector<8xf32> to vector<8x1xf32>
    %194 = arith.addf %191, %193 : vector<8x1xf32>
    %195 = arith.mulf %169, %169 : vector<8x8xf32>
    %cst_107 = arith.constant dense<0.000000e+00> : vector<8xf32>
    %196 = vector.multi_reduction <add>, %195, %cst_107 [1] : vector<8x8xf32> to vector<8xf32>
    %197 = vector.shape_cast %196 : vector<8xf32> to vector<8x1xf32>
    %cst_108 = arith.constant 0.000000e+00 : f32
    %198 = vector.broadcast %cst_108 : f32 to vector<8x1xf32>
    %199 = arith.addf %198, %197 : vector<8x1xf32>
    %200 = arith.mulf %173, %173 : vector<8x8xf32>
    %cst_109 = arith.constant dense<0.000000e+00> : vector<8xf32>
    %201 = vector.multi_reduction <add>, %200, %cst_109 [1] : vector<8x8xf32> to vector<8xf32>
    %202 = vector.shape_cast %201 : vector<8xf32> to vector<8x1xf32>
    %203 = arith.addf %199, %202 : vector<8x1xf32>
    %204 = arith.mulf %177, %177 : vector<8x8xf32>
    %cst_110 = arith.constant dense<0.000000e+00> : vector<8xf32>
    %205 = vector.multi_reduction <add>, %204, %cst_110 [1] : vector<8x8xf32> to vector<8xf32>
    %206 = vector.shape_cast %205 : vector<8xf32> to vector<8x1xf32>
    %207 = arith.addf %203, %206 : vector<8x1xf32>
    %208 = arith.mulf %181, %181 : vector<8x8xf32>
    %cst_111 = arith.constant dense<0.000000e+00> : vector<8xf32>
    %209 = vector.multi_reduction <add>, %208, %cst_111 [1] : vector<8x8xf32> to vector<8xf32>
    %210 = vector.shape_cast %209 : vector<8xf32> to vector<8x1xf32>
    %211 = arith.addf %207, %210 : vector<8x1xf32>
    %cst_112 = arith.constant 3.200000e+01 : f32
    %212 = vector.broadcast %cst_112 : f32 to vector<8x1xf32>
    %213 = arith.divf %194, %212 : vector<8x1xf32>
    %cst_113 = arith.constant 3.200000e+01 : f32
    %214 = vector.broadcast %cst_113 : f32 to vector<8x1xf32>
    %215 = arith.divf %211, %214 : vector<8x1xf32>
    %216 = arith.mulf %213, %213 : vector<8x1xf32>
    %217 = arith.subf %215, %216 : vector<8x1xf32>
    %cst_114 = arith.constant 9.99999974E-6 : f32
    %218 = vector.broadcast %cst_114 : f32 to vector<8x1xf32>
    %219 = arith.addf %217, %218 : vector<8x1xf32>
    %220 = math.rsqrt %219 : vector<8x1xf32>
    %c0_115 = arith.constant 0 : index
    %c0_116 = arith.constant 0 : index
    %221 = vector.load %arg15[%c0_115, %c0_116] : memref<1x16xf32, #tpu.memory_space<vmem>>, vector<1x16xf32>
    %222 = vector.broadcast %213 : vector<8x1xf32> to vector<8x8xf32>
    %223 = arith.subf %169, %222 : vector<8x8xf32>
    %224 = vector.broadcast %220 : vector<8x1xf32> to vector<8x8xf32>
    %225 = arith.mulf %223, %224 : vector<8x8xf32>
    %c0_117 = arith.constant 0 : index
    %c0_118 = arith.constant 0 : index
    %c0_119 = arith.constant 0 : index
    %226 = vector.load %arg13[%c0_117, %c0_118, %c0_119] : memref<4x1x8xf32, #tpu.memory_space<vmem>>, vector<1x1x8xf32>
    %227 = vector.shape_cast %226 : vector<1x1x8xf32> to vector<1x8xf32>
    %228 = vector.broadcast %227 : vector<1x8xf32> to vector<8x8xf32>
    %229 = arith.mulf %225, %228 : vector<8x8xf32>
    %c0_120 = arith.constant 0 : index
    %c0_121 = arith.constant 0 : index
    %c0_122 = arith.constant 0 : index
    %230 = vector.load %arg14[%c0_120, %c0_121, %c0_122] : memref<4x8x16xbf16, #tpu.memory_space<vmem>>, vector<1x8x16xbf16>
    %231 = vector.shape_cast %230 : vector<1x8x16xbf16> to vector<8x16xbf16>
    %232 = arith.truncf %229 : vector<8x8xf32> to vector<8x8xbf16>
    %cst_123 = arith.constant dense<0.000000e+00> : vector<8x16xf32>
    %233 = tpu.matmul %232, %231, %cst_123 {dimension_numbers = #tpu.dot_dimension_numbers<[1], [0], [0], [1], [0, 0, 1, 1], [], []>} : vector<8x8xbf16>, vector<8x16xbf16>, vector<8x16xf32> -> vector<8x16xf32>
    %cst_124 = arith.constant 0.000000e+00 : f32
    %234 = vector.broadcast %cst_124 : f32 to vector<8x16xf32>
    %235 = arith.addf %234, %233 : vector<8x16xf32>
    %236 = vector.broadcast %213 : vector<8x1xf32> to vector<8x8xf32>
    %237 = arith.subf %173, %236 : vector<8x8xf32>
    %238 = vector.broadcast %220 : vector<8x1xf32> to vector<8x8xf32>
    %239 = arith.mulf %237, %238 : vector<8x8xf32>
    %c1_125 = arith.constant 1 : index
    %c0_126 = arith.constant 0 : index
    %c0_127 = arith.constant 0 : index
    %240 = vector.load %arg13[%c1_125, %c0_126, %c0_127] : memref<4x1x8xf32, #tpu.memory_space<vmem>>, vector<1x1x8xf32>
    %241 = vector.shape_cast %240 : vector<1x1x8xf32> to vector<1x8xf32>
    %242 = vector.broadcast %241 : vector<1x8xf32> to vector<8x8xf32>
    %243 = arith.mulf %239, %242 : vector<8x8xf32>
    %c1_128 = arith.constant 1 : index
    %c0_129 = arith.constant 0 : index
    %c0_130 = arith.constant 0 : index
    %244 = vector.load %arg14[%c1_128, %c0_129, %c0_130] : memref<4x8x16xbf16, #tpu.memory_space<vmem>>, vector<1x8x16xbf16>
    %245 = vector.shape_cast %244 : vector<1x8x16xbf16> to vector<8x16xbf16>
    %246 = arith.truncf %243 : vector<8x8xf32> to vector<8x8xbf16>
    %cst_131 = arith.constant dense<0.000000e+00> : vector<8x16xf32>
    %247 = tpu.matmul %246, %245, %cst_131 {dimension_numbers = #tpu.dot_dimension_numbers<[1], [0], [0], [1], [0, 0, 1, 1], [], []>} : vector<8x8xbf16>, vector<8x16xbf16>, vector<8x16xf32> -> vector<8x16xf32>
    %248 = arith.addf %235, %247 : vector<8x16xf32>
    %249 = vector.broadcast %213 : vector<8x1xf32> to vector<8x8xf32>
    %250 = arith.subf %177, %249 : vector<8x8xf32>
    %251 = vector.broadcast %220 : vector<8x1xf32> to vector<8x8xf32>
    %252 = arith.mulf %250, %251 : vector<8x8xf32>
    %c2_132 = arith.constant 2 : index
    %c0_133 = arith.constant 0 : index
    %c0_134 = arith.constant 0 : index
    %253 = vector.load %arg13[%c2_132, %c0_133, %c0_134] : memref<4x1x8xf32, #tpu.memory_space<vmem>>, vector<1x1x8xf32>
    %254 = vector.shape_cast %253 : vector<1x1x8xf32> to vector<1x8xf32>
    %255 = vector.broadcast %254 : vector<1x8xf32> to vector<8x8xf32>
    %256 = arith.mulf %252, %255 : vector<8x8xf32>
    %c2_135 = arith.constant 2 : index
    %c0_136 = arith.constant 0 : index
    %c0_137 = arith.constant 0 : index
    %257 = vector.load %arg14[%c2_135, %c0_136, %c0_137] : memref<4x8x16xbf16, #tpu.memory_space<vmem>>, vector<1x8x16xbf16>
    %258 = vector.shape_cast %257 : vector<1x8x16xbf16> to vector<8x16xbf16>
    %259 = arith.truncf %256 : vector<8x8xf32> to vector<8x8xbf16>
    %cst_138 = arith.constant dense<0.000000e+00> : vector<8x16xf32>
    %260 = tpu.matmul %259, %258, %cst_138 {dimension_numbers = #tpu.dot_dimension_numbers<[1], [0], [0], [1], [0, 0, 1, 1], [], []>} : vector<8x8xbf16>, vector<8x16xbf16>, vector<8x16xf32> -> vector<8x16xf32>
    %261 = arith.addf %248, %260 : vector<8x16xf32>
    %262 = vector.broadcast %213 : vector<8x1xf32> to vector<8x8xf32>
    %263 = arith.subf %181, %262 : vector<8x8xf32>
    %264 = vector.broadcast %220 : vector<8x1xf32> to vector<8x8xf32>
    %265 = arith.mulf %263, %264 : vector<8x8xf32>
    %c3_139 = arith.constant 3 : index
    %c0_140 = arith.constant 0 : index
    %c0_141 = arith.constant 0 : index
    %266 = vector.load %arg13[%c3_139, %c0_140, %c0_141] : memref<4x1x8xf32, #tpu.memory_space<vmem>>, vector<1x1x8xf32>
    %267 = vector.shape_cast %266 : vector<1x1x8xf32> to vector<1x8xf32>
    %268 = vector.broadcast %267 : vector<1x8xf32> to vector<8x8xf32>
    %269 = arith.mulf %265, %268 : vector<8x8xf32>
    %c3_142 = arith.constant 3 : index
    %c0_143 = arith.constant 0 : index
    %c0_144 = arith.constant 0 : index
    %270 = vector.load %arg14[%c3_142, %c0_143, %c0_144] : memref<4x8x16xbf16, #tpu.memory_space<vmem>>, vector<1x8x16xbf16>
    %271 = vector.shape_cast %270 : vector<1x8x16xbf16> to vector<8x16xbf16>
    %272 = arith.truncf %269 : vector<8x8xf32> to vector<8x8xbf16>
    %cst_145 = arith.constant dense<0.000000e+00> : vector<8x16xf32>
    %273 = tpu.matmul %272, %271, %cst_145 {dimension_numbers = #tpu.dot_dimension_numbers<[1], [0], [0], [1], [0, 0, 1, 1], [], []>} : vector<8x8xbf16>, vector<8x16xbf16>, vector<8x16xf32> -> vector<8x16xf32>
    %274 = arith.addf %261, %273 : vector<8x16xf32>
    %275 = vector.broadcast %221 : vector<1x16xf32> to vector<8x16xf32>
    %276 = arith.addf %275, %274 : vector<8x16xf32>
    %c0_146 = arith.constant 0 : index
    %c0_147 = arith.constant 0 : index
    %277 = vector.load %arg16[%c0_146, %c0_147] : memref<8x8xf32, #tpu.memory_space<vmem>>, vector<8x8xf32>
    %c0_148 = arith.constant 0 : index
    %c0_149 = arith.constant 0 : index
    %c0_150 = arith.constant 0 : index
    %278 = vector.load %arg17[%c0_148, %c0_149, %c0_150] : memref<1x1x16xf32, #tpu.memory_space<vmem>>, vector<1x1x16xf32>
    %279 = vector.shape_cast %278 : vector<1x1x16xf32> to vector<1x16xf32>
    %c0_151 = arith.constant 0 : index
    %c0_152 = arith.constant 0 : index
    %c0_153 = arith.constant 0 : index
    %280 = vector.load %arg18[%c0_151, %c0_152, %c0_153] : memref<1x1x16xf32, #tpu.memory_space<vmem>>, vector<1x1x16xf32>
    %281 = vector.shape_cast %280 : vector<1x1x16xf32> to vector<1x16xf32>
    %cst_154 = arith.constant dense<0.000000e+00> : vector<8xf32>
    %282 = vector.multi_reduction <add>, %276, %cst_154 [1] : vector<8x16xf32> to vector<8xf32>
    %283 = vector.shape_cast %282 : vector<8xf32> to vector<8x1xf32>
    %cst_155 = arith.constant 1.600000e+01 : f32
    %284 = vector.broadcast %cst_155 : f32 to vector<8x1xf32>
    %285 = arith.divf %283, %284 : vector<8x1xf32>
    %286 = vector.broadcast %285 : vector<8x1xf32> to vector<8x16xf32>
    %287 = arith.subf %276, %286 : vector<8x16xf32>
    %288 = arith.mulf %287, %287 : vector<8x16xf32>
    %cst_156 = arith.constant dense<0.000000e+00> : vector<8xf32>
    %289 = vector.multi_reduction <add>, %288, %cst_156 [1] : vector<8x16xf32> to vector<8xf32>
    %290 = vector.shape_cast %289 : vector<8xf32> to vector<8x1xf32>
    %cst_157 = arith.constant 1.600000e+01 : f32
    %291 = vector.broadcast %cst_157 : f32 to vector<8x1xf32>
    %292 = arith.divf %290, %291 : vector<8x1xf32>
    %cst_158 = arith.constant 9.99999974E-6 : f32
    %293 = vector.broadcast %cst_158 : f32 to vector<8x1xf32>
    %294 = arith.addf %292, %293 : vector<8x1xf32>
    %295 = math.rsqrt %294 : vector<8x1xf32>
    %296 = vector.broadcast %295 : vector<8x1xf32> to vector<8x16xf32>
    %297 = arith.mulf %287, %296 : vector<8x16xf32>
    %298 = vector.broadcast %279 : vector<1x16xf32> to vector<8x16xf32>
    %299 = arith.mulf %297, %298 : vector<8x16xf32>
    %300 = vector.broadcast %281 : vector<1x16xf32> to vector<8x16xf32>
    %301 = arith.addf %299, %300 : vector<8x16xf32>
    %c0_159 = arith.constant 0 : index
    %c0_160 = arith.constant 0 : index
    %c0_161 = arith.constant 0 : index
    %302 = vector.load %arg19[%c0_159, %c0_160, %c0_161] : memref<1x16x48xbf16, #tpu.memory_space<vmem>>, vector<1x16x48xbf16>
    %303 = vector.shape_cast %302 : vector<1x16x48xbf16> to vector<16x48xbf16>
    %304 = arith.truncf %301 : vector<8x16xf32> to vector<8x16xbf16>
    %cst_162 = arith.constant dense<0.000000e+00> : vector<8x48xf32>
    %305 = tpu.matmul %304, %303, %cst_162 {dimension_numbers = #tpu.dot_dimension_numbers<[1], [0], [0], [1], [0, 0, 1, 1], [], []>} : vector<8x16xbf16>, vector<16x48xbf16>, vector<8x48xf32> -> vector<8x48xf32>
    %c0_163 = arith.constant 0 : index
    %c0_164 = arith.constant 0 : index
    %c0_165 = arith.constant 0 : index
    %306 = vector.load %arg20[%c0_163, %c0_164, %c0_165] : memref<1x1x48xf32, #tpu.memory_space<vmem>>, vector<1x1x48xf32>
    %307 = vector.shape_cast %306 : vector<1x1x48xf32> to vector<1x48xf32>
    %308 = vector.broadcast %307 : vector<1x48xf32> to vector<8x48xf32>
    %309 = arith.addf %305, %308 : vector<8x48xf32>
    %c0_166 = arith.constant 0 : index
    %c0_167 = arith.constant 0 : index
    %c0_168 = arith.constant 0 : index
    %310 = vector.load %arg21[%c0_166, %c0_167, %c0_168] : memref<1x16x16xbf16, #tpu.memory_space<vmem>>, vector<1x16x16xbf16>
    %311 = vector.shape_cast %310 : vector<1x16x16xbf16> to vector<16x16xbf16>
    %cst_169 = arith.constant 0.000000e+00 : f32
    %312 = vector.broadcast %cst_169 : f32 to vector<8x16xf32>
    %313 = vector.extract_strided_slice %309 {offsets = [0, 0], sizes = [8, 8], strides = [1, 1]} : vector<8x48xf32> to vector<8x8xf32>
    %314 = arith.truncf %313 : vector<8x8xf32> to vector<8x8xbf16>
    %315 = vector.extract_strided_slice %309 {offsets = [0, 16], sizes = [8, 8], strides = [1, 1]} : vector<8x48xf32> to vector<8x8xf32>
    %316 = arith.truncf %315 : vector<8x8xf32> to vector<8x8xbf16>
    %317 = vector.extract_strided_slice %309 {offsets = [0, 32], sizes = [8, 8], strides = [1, 1]} : vector<8x48xf32> to vector<8x8xf32>
    %318 = arith.truncf %317 : vector<8x8xf32> to vector<8x8xbf16>
    %cst_170 = arith.constant dense<0.000000e+00> : vector<8x8xf32>
    %319 = tpu.matmul %314, %316, %cst_170 {dimension_numbers = #tpu.dot_dimension_numbers<[1], [1], [0], [0], [0, 0, 1, 0], [], []>} : vector<8x8xbf16>, vector<8x8xbf16>, vector<8x8xf32> -> vector<8x8xf32>
    %cst_171 = arith.constant 0.353553385 : f32
    %320 = vector.broadcast %cst_171 : f32 to vector<8x8xf32>
    %321 = arith.mulf %319, %320 : vector<8x8xf32>
    %322 = arith.addf %321, %277 : vector<8x8xf32>
    %cst_172 = arith.constant dense<0xFF800000> : vector<8xf32>
    %323 = vector.multi_reduction <maximumf>, %322, %cst_172 [1] : vector<8x8xf32> to vector<8xf32>
    %324 = vector.shape_cast %323 : vector<8xf32> to vector<8x1xf32>
    %325 = vector.broadcast %324 : vector<8x1xf32> to vector<8x8xf32>
    %326 = arith.subf %322, %325 : vector<8x8xf32>
    %327 = math.exp %326 : vector<8x8xf32>
    %cst_173 = arith.constant dense<0.000000e+00> : vector<8xf32>
    %328 = vector.multi_reduction <add>, %327, %cst_173 [1] : vector<8x8xf32> to vector<8xf32>
    %329 = vector.shape_cast %328 : vector<8xf32> to vector<8x1xf32>
    %330 = vector.broadcast %329 : vector<8x1xf32> to vector<8x8xf32>
    %331 = arith.divf %327, %330 : vector<8x8xf32>
    %332 = arith.truncf %331 : vector<8x8xf32> to vector<8x8xbf16>
    %cst_174 = arith.constant dense<0.000000e+00> : vector<8x8xf32>
    %333 = tpu.matmul %332, %318, %cst_174 {dimension_numbers = #tpu.dot_dimension_numbers<[1], [0], [0], [1], [0, 0, 1, 1], [], []>} : vector<8x8xbf16>, vector<8x8xbf16>, vector<8x8xf32> -> vector<8x8xf32>
    %334 = vector.extract_strided_slice %311 {offsets = [0, 0], sizes = [8, 16], strides = [1, 1]} : vector<16x16xbf16> to vector<8x16xbf16>
    %335 = arith.truncf %333 : vector<8x8xf32> to vector<8x8xbf16>
    %cst_175 = arith.constant dense<0.000000e+00> : vector<8x16xf32>
    %336 = tpu.matmul %335, %334, %cst_175 {dimension_numbers = #tpu.dot_dimension_numbers<[1], [0], [0], [1], [0, 0, 1, 1], [], []>} : vector<8x8xbf16>, vector<8x16xbf16>, vector<8x16xf32> -> vector<8x16xf32>
    %337 = arith.addf %312, %336 : vector<8x16xf32>
    %338 = vector.extract_strided_slice %309 {offsets = [0, 8], sizes = [8, 8], strides = [1, 1]} : vector<8x48xf32> to vector<8x8xf32>
    %339 = arith.truncf %338 : vector<8x8xf32> to vector<8x8xbf16>
    %340 = vector.extract_strided_slice %309 {offsets = [0, 24], sizes = [8, 8], strides = [1, 1]} : vector<8x48xf32> to vector<8x8xf32>
    %341 = arith.truncf %340 : vector<8x8xf32> to vector<8x8xbf16>
    %342 = vector.extract_strided_slice %309 {offsets = [0, 40], sizes = [8, 8], strides = [1, 1]} : vector<8x48xf32> to vector<8x8xf32>
    %343 = arith.truncf %342 : vector<8x8xf32> to vector<8x8xbf16>
    %cst_176 = arith.constant dense<0.000000e+00> : vector<8x8xf32>
    %344 = tpu.matmul %339, %341, %cst_176 {dimension_numbers = #tpu.dot_dimension_numbers<[1], [1], [0], [0], [0, 0, 1, 0], [], []>} : vector<8x8xbf16>, vector<8x8xbf16>, vector<8x8xf32> -> vector<8x8xf32>
    %cst_177 = arith.constant 0.353553385 : f32
    %345 = vector.broadcast %cst_177 : f32 to vector<8x8xf32>
    %346 = arith.mulf %344, %345 : vector<8x8xf32>
    %347 = arith.addf %346, %277 : vector<8x8xf32>
    %cst_178 = arith.constant dense<0xFF800000> : vector<8xf32>
    %348 = vector.multi_reduction <maximumf>, %347, %cst_178 [1] : vector<8x8xf32> to vector<8xf32>
    %349 = vector.shape_cast %348 : vector<8xf32> to vector<8x1xf32>
    %350 = vector.broadcast %349 : vector<8x1xf32> to vector<8x8xf32>
    %351 = arith.subf %347, %350 : vector<8x8xf32>
    %352 = math.exp %351 : vector<8x8xf32>
    %cst_179 = arith.constant dense<0.000000e+00> : vector<8xf32>
    %353 = vector.multi_reduction <add>, %352, %cst_179 [1] : vector<8x8xf32> to vector<8xf32>
    %354 = vector.shape_cast %353 : vector<8xf32> to vector<8x1xf32>
    %355 = vector.broadcast %354 : vector<8x1xf32> to vector<8x8xf32>
    %356 = arith.divf %352, %355 : vector<8x8xf32>
    %357 = arith.truncf %356 : vector<8x8xf32> to vector<8x8xbf16>
    %cst_180 = arith.constant dense<0.000000e+00> : vector<8x8xf32>
    %358 = tpu.matmul %357, %343, %cst_180 {dimension_numbers = #tpu.dot_dimension_numbers<[1], [0], [0], [1], [0, 0, 1, 1], [], []>} : vector<8x8xbf16>, vector<8x8xbf16>, vector<8x8xf32> -> vector<8x8xf32>
    %359 = vector.extract_strided_slice %311 {offsets = [8, 0], sizes = [8, 16], strides = [1, 1]} : vector<16x16xbf16> to vector<8x16xbf16>
    %360 = arith.truncf %358 : vector<8x8xf32> to vector<8x8xbf16>
    %cst_181 = arith.constant dense<0.000000e+00> : vector<8x16xf32>
    %361 = tpu.matmul %360, %359, %cst_181 {dimension_numbers = #tpu.dot_dimension_numbers<[1], [0], [0], [1], [0, 0, 1, 1], [], []>} : vector<8x8xbf16>, vector<8x16xbf16>, vector<8x16xf32> -> vector<8x16xf32>
    %362 = arith.addf %337, %361 : vector<8x16xf32>
    %c0_182 = arith.constant 0 : index
    %c0_183 = arith.constant 0 : index
    %c0_184 = arith.constant 0 : index
    %363 = vector.load %arg23[%c0_182, %c0_183, %c0_184] : memref<1x1x16xf32, #tpu.memory_space<vmem>>, vector<1x1x16xf32>
    %364 = vector.shape_cast %363 : vector<1x1x16xf32> to vector<1x16xf32>
    %c0_185 = arith.constant 0 : index
    %c0_186 = arith.constant 0 : index
    %c0_187 = arith.constant 0 : index
    %365 = vector.load %arg22[%c0_185, %c0_186, %c0_187] : memref<1x1x16xf32, #tpu.memory_space<vmem>>, vector<1x1x16xf32>
    %366 = vector.shape_cast %365 : vector<1x1x16xf32> to vector<1x16xf32>
    %367 = vector.broadcast %366 : vector<1x16xf32> to vector<8x16xf32>
    %368 = arith.addf %362, %367 : vector<8x16xf32>
    %369 = vector.broadcast %364 : vector<1x16xf32> to vector<8x16xf32>
    %370 = arith.mulf %369, %368 : vector<8x16xf32>
    %371 = arith.addf %276, %370 : vector<8x16xf32>
    %c0_188 = arith.constant 0 : index
    %c0_189 = arith.constant 0 : index
    %c0_190 = arith.constant 0 : index
    %372 = vector.load %arg24[%c0_188, %c0_189, %c0_190] : memref<1x1x16xf32, #tpu.memory_space<vmem>>, vector<1x1x16xf32>
    %373 = vector.shape_cast %372 : vector<1x1x16xf32> to vector<1x16xf32>
    %c0_191 = arith.constant 0 : index
    %c0_192 = arith.constant 0 : index
    %c0_193 = arith.constant 0 : index
    %374 = vector.load %arg25[%c0_191, %c0_192, %c0_193] : memref<1x1x16xf32, #tpu.memory_space<vmem>>, vector<1x1x16xf32>
    %375 = vector.shape_cast %374 : vector<1x1x16xf32> to vector<1x16xf32>
    %cst_194 = arith.constant dense<0.000000e+00> : vector<8xf32>
    %376 = vector.multi_reduction <add>, %371, %cst_194 [1] : vector<8x16xf32> to vector<8xf32>
    %377 = vector.shape_cast %376 : vector<8xf32> to vector<8x1xf32>
    %cst_195 = arith.constant 1.600000e+01 : f32
    %378 = vector.broadcast %cst_195 : f32 to vector<8x1xf32>
    %379 = arith.divf %377, %378 : vector<8x1xf32>
    %380 = vector.broadcast %379 : vector<8x1xf32> to vector<8x16xf32>
    %381 = arith.subf %371, %380 : vector<8x16xf32>
    %382 = arith.mulf %381, %381 : vector<8x16xf32>
    %cst_196 = arith.constant dense<0.000000e+00> : vector<8xf32>
    %383 = vector.multi_reduction <add>, %382, %cst_196 [1] : vector<8x16xf32> to vector<8xf32>
    %384 = vector.shape_cast %383 : vector<8xf32> to vector<8x1xf32>
    %cst_197 = arith.constant 1.600000e+01 : f32
    %385 = vector.broadcast %cst_197 : f32 to vector<8x1xf32>
    %386 = arith.divf %384, %385 : vector<8x1xf32>
    %cst_198 = arith.constant 9.99999974E-6 : f32
    %387 = vector.broadcast %cst_198 : f32 to vector<8x1xf32>
    %388 = arith.addf %386, %387 : vector<8x1xf32>
    %389 = math.rsqrt %388 : vector<8x1xf32>
    %390 = vector.broadcast %389 : vector<8x1xf32> to vector<8x16xf32>
    %391 = arith.mulf %381, %390 : vector<8x16xf32>
    %392 = vector.broadcast %373 : vector<1x16xf32> to vector<8x16xf32>
    %393 = arith.mulf %391, %392 : vector<8x16xf32>
    %394 = vector.broadcast %375 : vector<1x16xf32> to vector<8x16xf32>
    %395 = arith.addf %393, %394 : vector<8x16xf32>
    %c0_199 = arith.constant 0 : index
    %c0_200 = arith.constant 0 : index
    %c0_201 = arith.constant 0 : index
    %396 = vector.load %arg26[%c0_199, %c0_200, %c0_201] : memref<1x16x32xbf16, #tpu.memory_space<vmem>>, vector<1x16x32xbf16>
    %397 = vector.shape_cast %396 : vector<1x16x32xbf16> to vector<16x32xbf16>
    %398 = arith.truncf %395 : vector<8x16xf32> to vector<8x16xbf16>
    %cst_202 = arith.constant dense<0.000000e+00> : vector<8x32xf32>
    %399 = tpu.matmul %398, %397, %cst_202 {dimension_numbers = #tpu.dot_dimension_numbers<[1], [0], [0], [1], [0, 0, 1, 1], [], []>} : vector<8x16xbf16>, vector<16x32xbf16>, vector<8x32xf32> -> vector<8x32xf32>
    %c0_203 = arith.constant 0 : index
    %c0_204 = arith.constant 0 : index
    %c0_205 = arith.constant 0 : index
    %400 = vector.load %arg27[%c0_203, %c0_204, %c0_205] : memref<1x1x32xf32, #tpu.memory_space<vmem>>, vector<1x1x32xf32>
    %401 = vector.shape_cast %400 : vector<1x1x32xf32> to vector<1x32xf32>
    %402 = vector.broadcast %401 : vector<1x32xf32> to vector<8x32xf32>
    %403 = arith.addf %399, %402 : vector<8x32xf32>
    %404 = arith.mulf %403, %403 : vector<8x32xf32>
    %405 = arith.mulf %403, %404 : vector<8x32xf32>
    %cst_206 = arith.constant 4.471500e-02 : f32
    %406 = vector.broadcast %cst_206 : f32 to vector<8x32xf32>
    %407 = arith.mulf %406, %405 : vector<8x32xf32>
    %408 = arith.addf %403, %407 : vector<8x32xf32>
    %cst_207 = arith.constant 0.797884583 : f32
    %409 = vector.broadcast %cst_207 : f32 to vector<8x32xf32>
    %410 = arith.mulf %409, %408 : vector<8x32xf32>
    %411 = math.tanh %410 : vector<8x32xf32>
    %cst_208 = arith.constant 1.000000e+00 : f32
    %412 = vector.broadcast %cst_208 : f32 to vector<8x32xf32>
    %413 = arith.addf %412, %411 : vector<8x32xf32>
    %cst_209 = arith.constant 5.000000e-01 : f32
    %414 = vector.broadcast %cst_209 : f32 to vector<8x32xf32>
    %415 = arith.mulf %414, %413 : vector<8x32xf32>
    %416 = arith.mulf %403, %415 : vector<8x32xf32>
    %c0_210 = arith.constant 0 : index
    %c0_211 = arith.constant 0 : index
    %c0_212 = arith.constant 0 : index
    %417 = vector.load %arg30[%c0_210, %c0_211, %c0_212] : memref<1x1x16xf32, #tpu.memory_space<vmem>>, vector<1x1x16xf32>
    %418 = vector.shape_cast %417 : vector<1x1x16xf32> to vector<1x16xf32>
    %c0_213 = arith.constant 0 : index
    %c0_214 = arith.constant 0 : index
    %c0_215 = arith.constant 0 : index
    %419 = vector.load %arg28[%c0_213, %c0_214, %c0_215] : memref<1x32x16xbf16, #tpu.memory_space<vmem>>, vector<1x32x16xbf16>
    %420 = vector.shape_cast %419 : vector<1x32x16xbf16> to vector<32x16xbf16>
    %421 = arith.truncf %416 : vector<8x32xf32> to vector<8x32xbf16>
    %cst_216 = arith.constant dense<0.000000e+00> : vector<8x16xf32>
    %422 = tpu.matmul %421, %420, %cst_216 {dimension_numbers = #tpu.dot_dimension_numbers<[1], [0], [0], [1], [0, 0, 1, 1], [], []>} : vector<8x32xbf16>, vector<32x16xbf16>, vector<8x16xf32> -> vector<8x16xf32>
    %c0_217 = arith.constant 0 : index
    %c0_218 = arith.constant 0 : index
    %c0_219 = arith.constant 0 : index
    %423 = vector.load %arg29[%c0_217, %c0_218, %c0_219] : memref<1x1x16xf32, #tpu.memory_space<vmem>>, vector<1x1x16xf32>
    %424 = vector.shape_cast %423 : vector<1x1x16xf32> to vector<1x16xf32>
    %425 = vector.broadcast %424 : vector<1x16xf32> to vector<8x16xf32>
    %426 = arith.addf %422, %425 : vector<8x16xf32>
    %427 = vector.broadcast %418 : vector<1x16xf32> to vector<8x16xf32>
    %428 = arith.mulf %427, %426 : vector<8x16xf32>
    %429 = arith.addf %371, %428 : vector<8x16xf32>
    %c0_220 = arith.constant 0 : index
    %c0_221 = arith.constant 0 : index
    %430 = vector.load %arg31[%c0_220, %c0_221] : memref<1x16xf32, #tpu.memory_space<vmem>>, vector<1x16xf32>
    %c0_222 = arith.constant 0 : index
    %c0_223 = arith.constant 0 : index
    %431 = vector.load %arg32[%c0_222, %c0_223] : memref<1x16xf32, #tpu.memory_space<vmem>>, vector<1x16xf32>
    %cst_224 = arith.constant dense<0.000000e+00> : vector<8xf32>
    %432 = vector.multi_reduction <add>, %429, %cst_224 [1] : vector<8x16xf32> to vector<8xf32>
    %433 = vector.shape_cast %432 : vector<8xf32> to vector<8x1xf32>
    %cst_225 = arith.constant 1.600000e+01 : f32
    %434 = vector.broadcast %cst_225 : f32 to vector<8x1xf32>
    %435 = arith.divf %433, %434 : vector<8x1xf32>
    %436 = vector.broadcast %435 : vector<8x1xf32> to vector<8x16xf32>
    %437 = arith.subf %429, %436 : vector<8x16xf32>
    %438 = arith.mulf %437, %437 : vector<8x16xf32>
    %cst_226 = arith.constant dense<0.000000e+00> : vector<8xf32>
    %439 = vector.multi_reduction <add>, %438, %cst_226 [1] : vector<8x16xf32> to vector<8xf32>
    %440 = vector.shape_cast %439 : vector<8xf32> to vector<8x1xf32>
    %cst_227 = arith.constant 1.600000e+01 : f32
    %441 = vector.broadcast %cst_227 : f32 to vector<8x1xf32>
    %442 = arith.divf %440, %441 : vector<8x1xf32>
    %cst_228 = arith.constant 9.99999974E-6 : f32
    %443 = vector.broadcast %cst_228 : f32 to vector<8x1xf32>
    %444 = arith.addf %442, %443 : vector<8x1xf32>
    %445 = math.rsqrt %444 : vector<8x1xf32>
    %446 = vector.broadcast %445 : vector<8x1xf32> to vector<8x16xf32>
    %447 = arith.mulf %437, %446 : vector<8x16xf32>
    %448 = vector.broadcast %430 : vector<1x16xf32> to vector<8x16xf32>
    %449 = arith.mulf %447, %448 : vector<8x16xf32>
    %450 = vector.broadcast %431 : vector<1x16xf32> to vector<8x16xf32>
    %451 = arith.addf %449, %450 : vector<8x16xf32>
    %c0_229 = arith.constant 0 : index
    %c0_230 = arith.constant 0 : index
    %452 = vector.load %arg33[%c0_229, %c0_230] : memref<2x8xf32, #tpu.memory_space<vmem>>, vector<2x8xf32>
    %cst_231 = arith.constant dense<0.000000e+00> : vector<2x16xf32>
    %453 = tpu.matmul %452, %451, %cst_231 {dimension_numbers = #tpu.dot_dimension_numbers<[1], [0], [0], [1], [0, 0, 1, 1], [], []>} : vector<2x8xf32>, vector<8x16xf32>, vector<2x16xf32> -> vector<2x16xf32>
    %c0_232 = arith.constant 0 : index
    %c0_233 = arith.constant 0 : index
    %454 = vector.load %arg34[%c0_232, %c0_233] : memref<16x8xbf16, #tpu.memory_space<vmem>>, vector<16x8xbf16>
    %455 = arith.truncf %453 : vector<2x16xf32> to vector<2x16xbf16>
    %cst_234 = arith.constant dense<0.000000e+00> : vector<2x8xf32>
    %456 = tpu.matmul %455, %454, %cst_234 {dimension_numbers = #tpu.dot_dimension_numbers<[1], [0], [0], [1], [0, 0, 1, 1], [], []>} : vector<2x16xbf16>, vector<16x8xbf16>, vector<2x8xf32> -> vector<2x8xf32>
    %c0_235 = arith.constant 0 : index
    %c0_236 = arith.constant 0 : index
    %457 = vector.load %arg35[%c0_235, %c0_236] : memref<1x8xf32, #tpu.memory_space<vmem>>, vector<1x8xf32>
    %458 = vector.broadcast %457 : vector<1x8xf32> to vector<2x8xf32>
    %459 = arith.addf %456, %458 : vector<2x8xf32>
    %c0_237 = arith.constant 0 : index
    %c0_238 = arith.constant 0 : index
    %460 = vector.load %arg36[%c0_237, %c0_238] : memref<2x8xf32, #tpu.memory_space<vmem>>, vector<2x8xf32>
    tpu.vector_store %arg36[%c0_237, %c0_238], %459 {strides = array<i32>} : memref<2x8xf32, #tpu.memory_space<vmem>>, vector<2x8xf32>,
    return
  }
}

</mosaic_0001>

<llo_original>
// kernel: tinyvit_forward.1
$region0: #{tinyvit_forward.1}
  #allocation0 [shape = 'u32[]', space=smem, size = 0x4, offset = 0x4, fixed_abs, tag = 'smem constant byte address 0x4 - core index']
  #allocation1 [shape = 'u32[72,128]{1,0:T(1,128)}', space=vmem, size = 0x9000, scoped, tag = 'internal scratch']
  %s0 = inlined_call_operand.smem [shape: u32[37], index: -1, kind: input, shape index: {}]
  %s1 = sld [smem:[%s0]]
  %s2 = scalar_lea.smem %s0, 1
  %s3 = sld [smem:[%s2]]
  %s4 = scalar_lea.smem %s0, 2
  %s5 = sld [smem:[%s4]]
  %s6 = scalar_lea.smem %s0, 3
  %s7 = sld [smem:[%s6]]
  %s8 = scalar_lea.smem %s0, 4
  %s9 = sld [smem:[%s8]]
  %s10 = scalar_lea.smem %s0, 5
  %s11 = sld [smem:[%s10]]
  %s12 = scalar_lea.smem %s0, 6
  %s13 = sld [smem:[%s12]]
  %s14 = scalar_lea.smem %s0, 7
  %s15 = sld [smem:[%s14]]
  %s16 = scalar_lea.smem %s0, 8
  %s17 = sld [smem:[%s16]]
  %s18 = scalar_lea.smem %s0, 9
  %s19 = sld [smem:[%s18]]
  %s20 = scalar_lea.smem %s0, 10
  %s21 = sld [smem:[%s20]]
  %s22 = scalar_lea.smem %s0, 11
  %s23 = sld [smem:[%s22]]
  %s24 = scalar_lea.smem %s0, 12
  %s25 = sld [smem:[%s24]]
  %s26 = scalar_lea.smem %s0, 13
  %s27 = sld [smem:[%s26]]
  %s28 = scalar_lea.smem %s0, 14
  %s29 = sld [smem:[%s28]]
  %s30 = scalar_lea.smem %s0, 15
  %s31 = sld [smem:[%s30]]
  %s32 = scalar_lea.smem %s0, 16
  %s33 = sld [smem:[%s32]]
  %s34 = scalar_lea.smem %s0, 17
  %s35 = sld [smem:[%s34]]
  %s36 = scalar_lea.smem %s0, 18
  %s37 = sld [smem:[%s36]]
  %s38 = scalar_lea.smem %s0, 19
  %s39 = sld [smem:[%s38]]
  %s40 = scalar_lea.smem %s0, 20
  %s41 = sld [smem:[%s40]]
  %s42 = scalar_lea.smem %s0, 21
  %s43 = sld [smem:[%s42]]
  %s44 = scalar_lea.smem %s0, 22
  %s45 = sld [smem:[%s44]]
  %s46 = scalar_lea.smem %s0, 23
  %s47 = sld [smem:[%s46]]
  %s48 = scalar_lea.smem %s0, 24
  %s49 = sld [smem:[%s48]]
  %s50 = scalar_lea.smem %s0, 25
  %s51 = sld [smem:[%s50]]
  %s52 = scalar_lea.smem %s0, 26
  %s53 = sld [smem:[%s52]]
  %s54 = scalar_lea.smem %s0, 27
  %s55 = sld [smem:[%s54]]
  %s56 = scalar_lea.smem %s0, 28
  %s57 = sld [smem:[%s56]]
  %s58 = scalar_lea.smem %s0, 29
  %s59 = sld [smem:[%s58]]
  %s60 = scalar_lea.smem %s0, 30
  %s61 = sld [smem:[%s60]]
  %s62 = scalar_lea.smem %s0, 31
  %s63 = sld [smem:[%s62]]
  %s64 = scalar_lea.smem %s0, 32
  %s65 = sld [smem:[%s64]]
  %s66 = scalar_lea.smem %s0, 33
  %s67 = sld [smem:[%s66]]
  %s68 = scalar_lea.smem %s0, 34
  %s69 = sld [smem:[%s68]]
  %s70 = scalar_lea.smem %s0, 35
  %s71 = sld [smem:[%s70]]
  %s72 = scalar_lea.smem %s0, 36
  %s73 = sld [smem:[%s72]]
  %s74 = sld [smem:[#allocation0]]
  $region154: #{tinyvit_forward.1} parent=0
    _
  %s76 = ssub.s32 1, %s74
  %s77 = scalar_select 0, %s76, %s74
  $region1: #{tinyvit_forward.1} parent=0
    #allocation2 [shape = 'u8[1024]{0}', space=vmem, size = 0x400, scoped, tag = 'output window, operand 0, single buffered']
    #allocation3 [shape = 's32[1]{0}', space=sflag, size = 0x4, scoped, tag = 'scoped memory for tinyvit_forward.1']
    %78 = vsyncpa [#allocation3], 0
    // Predicated region
    $region2: #{tinyvit_forward.1} parent=1 // pred_check
      _
    $region3: #{tinyvit_forward.1} parent=1 // pred_check_branch
      %80 = sbr.rel (0) target = $region5
    $region4: #{tinyvit_forward.1} parent=1 // pred_region
      _
    $region5: #{tinyvit_forward.1} parent=1 // pred_fallthru
      _
    // Predicated region
    $region6: #{tinyvit_forward.1} parent=1 // pred_check
      _
    $region7: #{tinyvit_forward.1} parent=1 // pred_check_branch
      %82 = sbr.rel (0) target = $region9
    $region8: #{tinyvit_forward.1} parent=1 // pred_region
      _
    $region9: #{tinyvit_forward.1} parent=1 // pred_fallthru
      _
    // Predicated region
    $region10: #{tinyvit_forward.1} parent=1 // pred_check
      _
    $region11: #{tinyvit_forward.1} parent=1 // pred_check_branch
      %84 = sbr.rel (0) target = $region13
    $region12: #{tinyvit_forward.1} parent=1 // pred_region
      _
    $region13: #{tinyvit_forward.1} parent=1 // pred_fallthru
      _
    // Predicated region
    $region14: #{tinyvit_forward.1} parent=1 // pred_check
      _
    $region15: #{tinyvit_forward.1} parent=1 // pred_check_branch
      %86 = sbr.rel (0) target = $region17
    $region16: #{tinyvit_forward.1} parent=1 // pred_region
      _
    $region17: #{tinyvit_forward.1} parent=1 // pred_fallthru
      _
    // Predicated region
    $region18: #{tinyvit_forward.1} parent=1 // pred_check
      _
    $region19: #{tinyvit_forward.1} parent=1 // pred_check_branch
      %88 = sbr.rel (0) target = $region21
    $region20: #{tinyvit_forward.1} parent=1 // pred_region
      _
    $region21: #{tinyvit_forward.1} parent=1 // pred_fallthru
      _
    // Predicated region
    $region22: #{tinyvit_forward.1} parent=1 // pred_check
      _
    $region23: #{tinyvit_forward.1} parent=1 // pred_check_branch
      %90 = sbr.rel (0) target = $region25
    $region24: #{tinyvit_forward.1} parent=1 // pred_region
      _
    $region25: #{tinyvit_forward.1} parent=1 // pred_fallthru
      _
    // Predicated region
    $region26: #{tinyvit_forward.1} parent=1 // pred_check
      _
    $region27: #{tinyvit_forward.1} parent=1 // pred_check_branch
      %92 = sbr.rel (0) target = $region29
    $region28: #{tinyvit_forward.1} parent=1 // pred_region
      _
    $region29: #{tinyvit_forward.1} parent=1 // pred_fallthru
      _
    // Predicated region
    $region30: #{tinyvit_forward.1} parent=1 // pred_check
      _
    $region31: #{tinyvit_forward.1} parent=1 // pred_check_branch
      %94 = sbr.rel (0) target = $region33
    $region32: #{tinyvit_forward.1} parent=1 // pred_region
      _
    $region33: #{tinyvit_forward.1} parent=1 // pred_fallthru
      _
    // Predicated region
    $region34: #{tinyvit_forward.1} parent=1 // pred_check
      _
    $region35: #{tinyvit_forward.1} parent=1 // pred_check_branch
      %96 = sbr.rel (0) target = $region37
    $region36: #{tinyvit_forward.1} parent=1 // pred_region
      _
    $region37: #{tinyvit_forward.1} parent=1 // pred_fallthru
      _
    // Predicated region
    $region38: #{tinyvit_forward.1} parent=1 // pred_check
      _
    $region39: #{tinyvit_forward.1} parent=1 // pred_check_branch
      %98 = sbr.rel (0) target = $region41
    $region40: #{tinyvit_forward.1} parent=1 // pred_region
      _
    $region41: #{tinyvit_forward.1} parent=1 // pred_fallthru
      _
    // Predicated region
    $region42: #{tinyvit_forward.1} parent=1 // pred_check
      _
    $region43: #{tinyvit_forward.1} parent=1 // pred_check_branch
      %100 = sbr.rel (0) target = $region45
    $region44: #{tinyvit_forward.1} parent=1 // pred_region
      _
    $region45: #{tinyvit_forward.1} parent=1 // pred_fallthru
      _
    // Predicated region
    $region46: #{tinyvit_forward.1} parent=1 // pred_check
      _
    $region47: #{tinyvit_forward.1} parent=1 // pred_check_branch
      %102 = sbr.rel (0) target = $region49
    $region48: #{tinyvit_forward.1} parent=1 // pred_region
      _
    $region49: #{tinyvit_forward.1} parent=1 // pred_fallthru
      _
    // Predicated region
    $region50: #{tinyvit_forward.1} parent=1 // pred_check
      _
    $region51: #{tinyvit_forward.1} parent=1 // pred_check_branch
      %104 = sbr.rel (0) target = $region53
    $region52: #{tinyvit_forward.1} parent=1 // pred_region
      _
    $region53: #{tinyvit_forward.1} parent=1 // pred_fallthru
      _
    // Predicated region
    $region54: #{tinyvit_forward.1} parent=1 // pred_check
      _
    $region55: #{tinyvit_forward.1} parent=1 // pred_check_branch
      %106 = sbr.rel (0) target = $region57
    $region56: #{tinyvit_forward.1} parent=1 // pred_region
      _
    $region57: #{tinyvit_forward.1} parent=1 // pred_fallthru
      _
    // Predicated region
    $region58: #{tinyvit_forward.1} parent=1 // pred_check
      _
    $region59: #{tinyvit_forward.1} parent=1 // pred_check_branch
      %108 = sbr.rel (0) target = $region61
    $region60: #{tinyvit_forward.1} parent=1 // pred_region
      _
    $region61: #{tinyvit_forward.1} parent=1 // pred_fallthru
      _
    // Predicated region
    $region62: #{tinyvit_forward.1} parent=1 // pred_check
      _
    $region63: #{tinyvit_forward.1} parent=1 // pred_check_branch
      %110 = sbr.rel (0) target = $region65
    $region64: #{tinyvit_forward.1} parent=1 // pred_region
      _
    $region65: #{tinyvit_forward.1} parent=1 // pred_fallthru
      _
    // Predicated region
    $region66: #{tinyvit_forward.1} parent=1 // pred_check
      _
    $region67: #{tinyvit_forward.1} parent=1 // pred_check_branch
      %112 = sbr.rel (0) target = $region69
    $region68: #{tinyvit_forward.1} parent=1 // pred_region
      _
    $region69: #{tinyvit_forward.1} parent=1 // pred_fallthru
      _
    // Predicated region
    $region70: #{tinyvit_forward.1} parent=1 // pred_check
      _
    $region71: #{tinyvit_forward.1} parent=1 // pred_check_branch
      %114 = sbr.rel (0) target = $region73
    $region72: #{tinyvit_forward.1} parent=1 // pred_region
      _
    $region73: #{tinyvit_forward.1} parent=1 // pred_fallthru
      _
    // Predicated region
    $region74: #{tinyvit_forward.1} parent=1 // pred_check
      _
    $region75: #{tinyvit_forward.1} parent=1 // pred_check_branch
      %116 = sbr.rel (0) target = $region77
    $region76: #{tinyvit_forward.1} parent=1 // pred_region
      _
    $region77: #{tinyvit_forward.1} parent=1 // pred_fallthru
      _
    // Predicated region
    $region78: #{tinyvit_forward.1} parent=1 // pred_check
      _
    $region79: #{tinyvit_forward.1} parent=1 // pred_check_branch
      %118 = sbr.rel (0) target = $region81
    $region80: #{tinyvit_forward.1} parent=1 // pred_region
      _
    $region81: #{tinyvit_forward.1} parent=1 // pred_fallthru
      _
    // Predicated region
    $region82: #{tinyvit_forward.1} parent=1 // pred_check
      _
    $region83: #{tinyvit_forward.1} parent=1 // pred_check_branch
      %120 = sbr.rel (0) target = $region85
    $region84: #{tinyvit_forward.1} parent=1 // pred_region
      _
    $region85: #{tinyvit_forward.1} parent=1 // pred_fallthru
      _
    // Predicated region
    $region86: #{tinyvit_forward.1} parent=1 // pred_check
      _
    $region87: #{tinyvit_forward.1} parent=1 // pred_check_branch
      %122 = sbr.rel (0) target = $region89
    $region88: #{tinyvit_forward.1} parent=1 // pred_region
      _
    $region89: #{tinyvit_forward.1} parent=1 // pred_fallthru
      _
    // Predicated region
    $region90: #{tinyvit_forward.1} parent=1 // pred_check
      _
    $region91: #{tinyvit_forward.1} parent=1 // pred_check_branch
      %124 = sbr.rel (0) target = $region93
    $region92: #{tinyvit_forward.1} parent=1 // pred_region
      _
    $region93: #{tinyvit_forward.1} parent=1 // pred_fallthru
      _
    // Predicated region
    $region94: #{tinyvit_forward.1} parent=1 // pred_check
      _
    $region95: #{tinyvit_forward.1} parent=1 // pred_check_branch
      %126 = sbr.rel (0) target = $region97
    $region96: #{tinyvit_forward.1} parent=1 // pred_region
      _
    $region97: #{tinyvit_forward.1} parent=1 // pred_fallthru
      _
    // Predicated region
    $region98: #{tinyvit_forward.1} parent=1 // pred_check
      _
    $region99: #{tinyvit_forward.1} parent=1 // pred_check_branch
      %128 = sbr.rel (0) target = $region101
    $region100: #{tinyvit_forward.1} parent=1 // pred_region
      _
    $region101: #{tinyvit_forward.1} parent=1 // pred_fallthru
      _
    // Predicated region
    $region102: #{tinyvit_forward.1} parent=1 // pred_check
      _
    $region103: #{tinyvit_forward.1} parent=1 // pred_check_branch
      %130 = sbr.rel (0) target = $region105
    $region104: #{tinyvit_forward.1} parent=1 // pred_region
      _
    $region105: #{tinyvit_forward.1} parent=1 // pred_fallthru
      _
    // Predicated region
    $region106: #{tinyvit_forward.1} parent=1 // pred_check
      _
    $region107: #{tinyvit_forward.1} parent=1 // pred_check_branch
      %132 = sbr.rel (0) target = $region109
    $region108: #{tinyvit_forward.1} parent=1 // pred_region
      _
    $region109: #{tinyvit_forward.1} parent=1 // pred_fallthru
      _
    // Predicated region
    $region110: #{tinyvit_forward.1} parent=1 // pred_check
      _
    $region111: #{tinyvit_forward.1} parent=1 // pred_check_branch
      %134 = sbr.rel (0) target = $region113
    $region112: #{tinyvit_forward.1} parent=1 // pred_region
      _
    $region113: #{tinyvit_forward.1} parent=1 // pred_fallthru
      _
    // Predicated region
    $region114: #{tinyvit_forward.1} parent=1 // pred_check
      _
    $region115: #{tinyvit_forward.1} parent=1 // pred_check_branch
      %136 = sbr.rel (0) target = $region117
    $region116: #{tinyvit_forward.1} parent=1 // pred_region
      _
    $region117: #{tinyvit_forward.1} parent=1 // pred_fallthru
      _
    // Predicated region
    $region118: #{tinyvit_forward.1} parent=1 // pred_check
      _
    $region119: #{tinyvit_forward.1} parent=1 // pred_check_branch
      %138 = sbr.rel (0) target = $region121
    $region120: #{tinyvit_forward.1} parent=1 // pred_region
      _
    $region121: #{tinyvit_forward.1} parent=1 // pred_fallthru
      _
    // Predicated region
    $region122: #{tinyvit_forward.1} parent=1 // pred_check
      _
    $region123: #{tinyvit_forward.1} parent=1 // pred_check_branch
      %140 = sbr.rel (0) target = $region125
    $region124: #{tinyvit_forward.1} parent=1 // pred_region
      _
    $region125: #{tinyvit_forward.1} parent=1 // pred_fallthru
      _
    // Predicated region
    $region126: #{tinyvit_forward.1} parent=1 // pred_check
      _
    $region127: #{tinyvit_forward.1} parent=1 // pred_check_branch
      %142 = sbr.rel (0) target = $region129
    $region128: #{tinyvit_forward.1} parent=1 // pred_region
      _
    $region129: #{tinyvit_forward.1} parent=1 // pred_fallthru
      _
    // Predicated region
    $region130: #{tinyvit_forward.1} parent=1 // pred_check
      _
    $region131: #{tinyvit_forward.1} parent=1 // pred_check_branch
      %144 = sbr.rel (0) target = $region133
    $region132: #{tinyvit_forward.1} parent=1 // pred_region
      _
    $region133: #{tinyvit_forward.1} parent=1 // pred_fallthru
      _
    // Predicated region
    $region134: #{tinyvit_forward.1} parent=1 // pred_check
      _
    $region135: #{tinyvit_forward.1} parent=1 // pred_check_branch
      %146 = sbr.rel (0) target = $region137
    $region136: #{tinyvit_forward.1} parent=1 // pred_region
      _
    $region137: #{tinyvit_forward.1} parent=1 // pred_fallthru
      _
    // Predicated region
    $region138: #{tinyvit_forward.1} parent=1 // pred_check
      _
    $region139: #{tinyvit_forward.1} parent=1 // pred_check_branch
      %148 = sbr.rel (0) target = $region141
    $region140: #{tinyvit_forward.1} parent=1 // pred_region
      _
    $region141: #{tinyvit_forward.1} parent=1 // pred_fallthru
      _
    // Predicated region
    $region142: #{tinyvit_forward.1} parent=1 // pred_check
      _
    $region143: #{tinyvit_forward.1} parent=1 // pred_check_branch
      %150 = sbr.rel (0) target = $region145
    $region144: #{tinyvit_forward.1} parent=1 // pred_region
      _
    $region145: #{tinyvit_forward.1} parent=1 // pred_fallthru
      _
    %v152 = vld [vmem:[%s1] sm:$0xff]
    %v153 = vld [vmem:[%s1 + $0x8] sm:$0xff]
    %v154 = vld [vmem:[%s1 + $0x10] sm:$0xff]
    %v155 = vld [vmem:[%s1 + $0x18] sm:$0xff]
    %v156 = vld [vmem:[%s3] sm:$0xf]
    %v157 = vld [vmem:[%s3 + $0x4] sm:$0xf]
    %v158 = vld [vmem:[%s3 + $0x8] sm:$0xf]
    %v159 = vld [vmem:[%s3 + $0xc] sm:$0xf]
    %v160 = vld [vmem:[%s3 + $0x10] sm:$0xf]
    %v161 = vld [vmem:[%s3 + $0x14] sm:$0xf]
    %v162 = vld [vmem:[%s3 + $0x18] sm:$0xf]
    %v163 = vld [vmem:[%s3 + $0x1c] sm:$0xf]
    %v164 = vpack.c.bf16 %v153, %v152
    %v165 = vpack.c.bf16 %v155, %v154
    %v166 = vld [vmem:[%s5] sm:$0x1]
    %v168 = vperm.slane %v166, 0
    %v178 = vunpack.c.l.b16 %v156
    %v179 = vunpack.c.l.b16 %v157
    %v180 = vunpack.c.l.b16 %v158
    %v181 = vunpack.c.l.b16 %v159
    %v182 = vunpack.c.l.b16 %v160
    %v183 = vunpack.c.l.b16 %v161
    %v184 = vunpack.c.l.b16 %v162
    %v185 = vunpack.c.l.b16 %v163
    %v186 = vpack.c.b16 %v179, %v178
    %v187 = vpack.c.b16 %v181, %v180
    %v188 = vpack.c.b16 %v183, %v182
    %v189 = vpack.c.b16 %v185, %v184
    %vm194 = vcmask 523264
    %v196 = vsel %vm194, %v164, 0
    %v199 = vsel %vm194, %v165, 0
    %201 = vmatpush.bf16.msra.mxu0 0
    %202 = vmatpush.bf16.msra.mxu0 0
    %203 = vmatpush.bf16.msra.mxu0 0
    %204 = vmatpush.bf16.msra.mxu0 0
    %205 = vmatpush.bf16.msra.mxu0 %v189
    %206 = vmatpush.bf16.msra.mxu0 %v188
    %207 = vmatpush.bf16.msra.mxu0 %v187
    %208 = vmatpush.bf16.msra.mxu0 %v186
    %209 = vmatmul.bf16.gmra.mxu0 %v196
    %v210 = vpop.f32.mrf.mxu0
    %v211 = vadd.f32 %v168, %v210
    %v212 = vpop.f32.mrf.mxu0
    %v213 = vadd.f32 %v168, %v212
    %214 = vmatmul.bf16.gmra.mxu0 %v199
    %v215 = vpop.f32.mrf.mxu0
    %v216 = vadd.f32 %v168, %v215
    %v217 = vpop.f32.mrf.mxu0
    %v218 = vadd.f32 %v168, %v217
    %219 = vdwg.mxu0
    %v220 = vld [vmem:[%s7] sm:$0x1]
    %v221 = vld [vmem:[%s9] sm:$0x1]
    %vm222 = vcmask 64512
    %v223 = vsel %vm222, %v211, 0.0
    %224 = vadd.xlane.f32.xlu0 %v223
    %v225 = vpop.xlane.xlu0 %224
    %v226 = vsel %vm222, %v213, 0.0
    %227 = vadd.xlane.f32.xlu0 %v226
    %v228 = vpop.xlane.xlu0 %227
    %v229 = vsel %vm222, %v216, 0.0
    %230 = vadd.xlane.f32.xlu0 %v229
    %v231 = vpop.xlane.xlu0 %230
    %v232 = vsel %vm222, %v218, 0.0
    %233 = vadd.xlane.f32.xlu0 %v232
    %v234 = vpop.xlane.xlu0 %233
    %v235 = vrcp.pop 8.0
    %v236 = vmul.f32 8.0, %v235
    %v237 = vsub.f32 1.0, %v236
    %v238 = vmul.f32 %v235, %v237
    %v239 = vadd.f32 %v235, %v238
    %vm240 = vweird.f32 %v235
    %v241 = vsel %vm240, %v235, %v239
    %v242 = vmul.f32 %v225, %v241
    %v243 = vmul.f32 %v228, %v241
    %v244 = vmul.f32 %v231, %v241
    %v245 = vmul.f32 %v234, %v241
    %v246 = vsub.f32 %v211, %v242
    %v247 = vsub.f32 %v213, %v243
    %v248 = vsub.f32 %v216, %v244
    %v249 = vsub.f32 %v218, %v245
    %v250 = vmul.f32 %v246, %v246
    %v251 = vmul.f32 %v247, %v247
    %v252 = vmul.f32 %v248, %v248
    %v253 = vmul.f32 %v249, %v249
    %v254 = vsel %vm222, %v250, 0.0
    %255 = vadd.xlane.f32.xlu0 %v254
    %v256 = vpop.xlane.xlu0 %255
    %v257 = vsel %vm222, %v251, 0.0
    %258 = vadd.xlane.f32.xlu0 %v257
    %v259 = vpop.xlane.xlu0 %258
    %v260 = vsel %vm222, %v252, 0.0
    %261 = vadd.xlane.f32.xlu0 %v260
    %v262 = vpop.xlane.xlu0 %261
    %v263 = vsel %vm222, %v253, 0.0
    %264 = vadd.xlane.f32.xlu0 %v263
    %v265 = vpop.xlane.xlu0 %264
    %v266 = vmul.f32 %v256, %v241
    %v267 = vmul.f32 %v259, %v241
    %v268 = vmul.f32 %v262, %v241
    %v269 = vmul.f32 %v265, %v241
    %v270 = vadd.f32 %v266, 1e-05
    %v271 = vadd.f32 %v267, 1e-05
    %v272 = vadd.f32 %v268, 1e-05
    %v273 = vadd.f32 %v269, 1e-05
    %v274 = vrsqrt.pop %v270
    %v275 = vmul.f32 %v274, %v270
    %v276 = vmul.f32 %v275, %v274
    %v277 = vmul.f32 0.5, %v276
    %v278 = vsub.f32 1.5, %v277
    %v279 = vmul.f32 %v274, %v278
    %vm280 = vweird.f32 %v270
    %vm281 = vweird.f32 %v274
    %vm282 = vmor %vm280, %vm281
    %v283 = vsel %vm282, %v274, %v279
    %v284 = vrsqrt.pop %v271
    %v285 = vmul.f32 %v284, %v271
    %v286 = vmul.f32 %v285, %v284
    %v287 = vmul.f32 0.5, %v286
    %v288 = vsub.f32 1.5, %v287
    %v289 = vmul.f32 %v284, %v288
    %vm290 = vweird.f32 %v271
    %vm291 = vweird.f32 %v284
    %vm292 = vmor %vm290, %vm291
    %v293 = vsel %vm292, %v284, %v289
    %v294 = vrsqrt.pop %v272
    %v295 = vmul.f32 %v294, %v272
    %v296 = vmul.f32 %v295, %v294
    %v297 = vmul.f32 0.5, %v296
    %v298 = vsub.f32 1.5, %v297
    %v299 = vmul.f32 %v294, %v298
    %vm300 = vweird.f32 %v272
    %vm301 = vweird.f32 %v294
    %vm302 = vmor %vm300, %vm301
    %v303 = vsel %vm302, %v294, %v299
    %v304 = vrsqrt.pop %v273
    %v305 = vmul.f32 %v304, %v273
    %v306 = vmul.f32 %v305, %v304
    %v307 = vmul.f32 0.5, %v306
    %v308 = vsub.f32 1.5, %v307
    %v309 = vmul.f32 %v304, %v308
    %vm310 = vweird.f32 %v273
    %vm311 = vweird.f32 %v304
    %vm312 = vmor %vm310, %vm311
    %v313 = vsel %vm312, %v304, %v309
    %v314 = vmul.f32 %v246, %v283
    %v315 = vmul.f32 %v247, %v293
    %v316 = vmul.f32 %v248, %v303
    %v317 = vmul.f32 %v249, %v313
    %v319 = vperm.slane %v220, 0
    %v321 = vmul.f32 %v314, %v319
    %v322 = vmul.f32 %v315, %v319
    %v323 = vmul.f32 %v316, %v319
    %v324 = vmul.f32 %v317, %v319
    %v326 = vperm.slane %v221, 0
    %v328 = vadd.f32 %v321, %v326
    %v329 = vadd.f32 %v322, %v326
    %v330 = vadd.f32 %v323, %v326
    %v331 = vadd.f32 %v324, %v326
    %v332 = vld [vmem:[%s13] sm:$0xf]
    %v333 = vpack.c.bf16 %v329, %v328
    %v334 = vpack.c.bf16 %v331, %v330
    %v335 = vld [vmem:[%s15] sm:$0x1]
    %v337 = vperm.slane %v335, 0
    %v340 = vsel %vm222, %v333, 0
    %v343 = vsel %vm222, %v334, 0
    %vm345 = vcmask 1043456
    %v347 = vsel %vm345, %v332, 0
    %349 = vmatpush.bf16.msra.mxu0 0
    %350 = vmatpush.bf16.msra.mxu0 0
    %351 = vmatpush.bf16.msra.mxu0 0
    %352 = vmatpush.bf16.msra.mxu0 0
    %353 = vmatpush.bf16.msra.mxu0 0
    %354 = vmatpush.bf16.msra.mxu0 0
    %355 = vmatpush.bf16.msra.mxu0 0
    %356 = vmatpush.bf16.msra.mxu0 %v347
    %357 = vmatmul.bf16.gmra.mxu0 %v340
    %v358 = vpop.f32.mrf.mxu0
    %v359 = vadd.f32 %v337, %v358
    %v360 = vpop.f32.mrf.mxu0
    %v361 = vadd.f32 %v337, %v360
    %362 = vmatmul.bf16.gmra.mxu0 %v343
    %v363 = vpop.f32.mrf.mxu0
    %v364 = vadd.f32 %v337, %v363
    %v365 = vpop.f32.mrf.mxu0
    %v366 = vadd.f32 %v337, %v365
    %367 = vdwg.mxu0
    %v368 = vmul.f32 %v359, %v359
    %v369 = vmul.f32 %v361, %v361
    %v370 = vmul.f32 %v364, %v364
    %v371 = vmul.f32 %v366, %v366
    %v372 = vmul.f32 %v359, %v368
    %v373 = vmul.f32 %v361, %v369
    %v374 = vmul.f32 %v364, %v370
    %v375 = vmul.f32 %v366, %v371
    %v376 = vmul.f32 %v372, 0.044715
    %v377 = vmul.f32 %v373, 0.044715
    %v378 = vmul.f32 %v374, 0.044715
    %v379 = vmul.f32 %v375, 0.044715
    %v380 = vadd.f32 %v359, %v376
    %v381 = vadd.f32 %v361, %v377
    %v382 = vadd.f32 %v364, %v378
    %v383 = vadd.f32 %v366, %v379
    %v384 = vmul.f32 %v380, 0.7978846
    %v385 = vmul.f32 %v381, 0.7978846
    %v386 = vmul.f32 %v382, 0.7978846
    %v387 = vmul.f32 %v383, 0.7978846
    %v388 = vtanh.pop %v384
    %v389 = vtanh.pop %v385
    %v390 = vtanh.pop %v386
    %v391 = vtanh.pop %v387
    %v392 = vadd.f32 %v388, 1.0
    %v393 = vadd.f32 %v389, 1.0
    %v394 = vadd.f32 %v390, 1.0
    %v395 = vadd.f32 %v391, 1.0
    %v396 = vmul.f32 %v392, 0.5
    %v397 = vmul.f32 %v393, 0.5
    %v398 = vmul.f32 %v394, 0.5
    %v399 = vmul.f32 %v395, 0.5
    %v400 = vmul.f32 %v359, %v396
    %v401 = vmul.f32 %v361, %v397
    %v402 = vmul.f32 %v364, %v398
    %v403 = vmul.f32 %v366, %v399
    %v404 = vrot.slane %v400, 3
    %v405 = vrot.slane %v401, 3
    %v406 = vrot.slane %v402, 3
    %v407 = vrot.slane %v403, 3
    %v408 = vlaneseq
    %v409 = vshrl.u32 %v408, 7
    %vm410 = vcmp.lt.s32.totalorder %v409, 5
    %v411 = vsel %vm410, %v406, %v407
    %v412 = vsel %vm410, %v405, %v406
    %v413 = vsel %vm410, %v404, %v405
    %v414 = vsel %vm410, %v407, %v404
    %v415 = vld [vmem:[%s11] sm:$0xff]
    %v416 = vld [vmem:[%s11 + $0x8] sm:$0xff]
    %v417 = vld [vmem:[%s11 + $0x10] sm:$0xff]
    %v418 = vld [vmem:[%s11 + $0x18] sm:$0xff]
    %420 = vset.pattern.permute.xlu0 0
    %421 = vperm.xlu0 %420, %v415
    %v422 = vpop.permute.xlu0 %421
    %425 = vset.pattern.permute.xlu0 0
    %426 = vperm.xlu0 %425, %v416
    %v427 = vpop.permute.xlu0 %426
    %430 = vset.pattern.permute.xlu0 0
    %431 = vperm.xlu0 %430, %v417
    %v432 = vpop.permute.xlu0 %431
    %435 = vset.pattern.permute.xlu0 0
    %436 = vperm.xlu0 %435, %v418
    %v437 = vpop.permute.xlu0 %436
    %v439 = vmul.f32 %v414, %v422
    %v440 = vmul.f32 %v413, %v427
    %v441 = vmul.f32 %v412, %v432
    %v442 = vmul.f32 %v411, %v437
    %v443 = vld [vmem:[%s17] sm:$0x1]
    %v445 = vperm.slane %v443, 0
    %v447 = vmul.f32 %v439, %v445
    %v448 = vmul.f32 %v440, %v445
    %v449 = vmul.f32 %v441, %v445
    %v450 = vmul.f32 %v442, %v445
    %v451 = vadd.f32 %v447, 0.0
    %v452 = vadd.f32 %v448, 0.0
    %v453 = vadd.f32 %v449, 0.0
    %v454 = vadd.f32 %v450, 0.0
    %v455 = vrot.slane %v400, 4
    %v456 = vrot.slane %v401, 4
    %v457 = vrot.slane %v402, 4
    %v458 = vrot.slane %v403, 4
    %vm459 = vcmp.lt.s32.totalorder %v409, 4
    %v460 = vsel %vm459, %v457, %v458
    %v461 = vsel %vm459, %v456, %v457
    %v462 = vsel %vm459, %v455, %v456
    %v463 = vsel %vm459, %v458, %v455
    %s464 = scalar_lea.vmem %s11, 32
    %v465 = vld [vmem:[%s464] sm:$0xff]
    %v466 = vld [vmem:[%s464 + $0x8] sm:$0xff]
    %v467 = vld [vmem:[%s464 + $0x10] sm:$0xff]
    %v468 = vld [vmem:[%s464 + $0x18] sm:$0xff]
    %470 = vset.pattern.permute.xlu0 0
    %471 = vperm.xlu0 %470, %v465
    %v472 = vpop.permute.xlu0 %471
    %475 = vset.pattern.permute.xlu0 0
    %476 = vperm.xlu0 %475, %v466
    %v477 = vpop.permute.xlu0 %476
    %480 = vset.pattern.permute.xlu0 0
    %481 = vperm.xlu0 %480, %v467
    %v482 = vpop.permute.xlu0 %481
    %485 = vset.pattern.permute.xlu0 0
    %486 = vperm.xlu0 %485, %v468
    %v487 = vpop.permute.xlu0 %486
    %v489 = vmul.f32 %v463, %v472
    %v490 = vmul.f32 %v462, %v477
    %v491 = vmul.f32 %v461, %v482
    %v492 = vmul.f32 %v460, %v487
    %s493 = scalar_lea.vmem %s17, 1
    %v494 = vld [vmem:[%s493] sm:$0x1]
    %v496 = vperm.slane %v494, 0
    %v498 = vmul.f32 %v489, %v496
    %v499 = vmul.f32 %v490, %v496
    %v500 = vmul.f32 %v491, %v496
    %v501 = vmul.f32 %v492, %v496
    %v502 = vadd.f32 %v451, %v498
    %v503 = vadd.f32 %v452, %v499
    %v504 = vadd.f32 %v453, %v500
    %v505 = vadd.f32 %v454, %v501
    %v506 = vrot.slane %v400, 5
    %v507 = vrot.slane %v401, 5
    %v508 = vrot.slane %v402, 5
    %v509 = vrot.slane %v403, 5
    %vm510 = vcmp.lt.s32.totalorder %v409, 3
    %v511 = vsel %vm510, %v508, %v509
    %v512 = vsel %vm510, %v507, %v508
    %v513 = vsel %vm510, %v506, %v507
    %v514 = vsel %vm510, %v509, %v506
    %s515 = scalar_lea.vmem %s11, 64
    %v516 = vld [vmem:[%s515] sm:$0xff]
    %v517 = vld [vmem:[%s515 + $0x8] sm:$0xff]
    %v518 = vld [vmem:[%s515 + $0x10] sm:$0xff]
    %v519 = vld [vmem:[%s515 + $0x18] sm:$0xff]
    %521 = vset.pattern.permute.xlu0 0
    %522 = vperm.xlu0 %521, %v516
    %v523 = vpop.permute.xlu0 %522
    %526 = vset.pattern.permute.xlu0 0
    %527 = vperm.xlu0 %526, %v517
    %v528 = vpop.permute.xlu0 %527
    %531 = vset.pattern.permute.xlu0 0
    %532 = vperm.xlu0 %531, %v518
    %v533 = vpop.permute.xlu0 %532
    %536 = vset.pattern.permute.xlu0 0
    %537 = vperm.xlu0 %536, %v519
    %v538 = vpop.permute.xlu0 %537
    %v540 = vmul.f32 %v514, %v523
    %v541 = vmul.f32 %v513, %v528
    %v542 = vmul.f32 %v512, %v533
    %v543 = vmul.f32 %v511, %v538
    %s544 = scalar_lea.vmem %s17, 2
    %v545 = vld [vmem:[%s544] sm:$0x1]
    %v547 = vperm.slane %v545, 0
    %v549 = vmul.f32 %v540, %v547
    %v550 = vmul.f32 %v541, %v547
    %v551 = vmul.f32 %v542, %v547
    %v552 = vmul.f32 %v543, %v547
    %v553 = vadd.f32 %v502, %v549
    %v554 = vadd.f32 %v503, %v550
    %v555 = vadd.f32 %v504, %v551
    %v556 = vadd.f32 %v505, %v552
    %v557 = vrot.slane %v400, 7
    %v558 = vrot.slane %v401, 7
    %v559 = vrot.slane %v402, 7
    %v560 = vrot.slane %v403, 7
    %vm561 = vcmp.lt.s32.totalorder %v409, 1
    %v562 = vsel %vm561, %v559, %v560
    %v563 = vsel %vm561, %v558, %v559
    %v564 = vsel %vm561, %v557, %v558
    %v565 = vsel %vm561, %v560, %v557
    %s566 = scalar_lea.vmem %s11, 96
    %v567 = vld [vmem:[%s566] sm:$0xff]
    %v568 = vld [vmem:[%s566 + $0x8] sm:$0xff]
    %v569 = vld [vmem:[%s566 + $0x10] sm:$0xff]
    %v570 = vld [vmem:[%s566 + $0x18] sm:$0xff]
    %572 = vset.pattern.permute.xlu0 0
    %573 = vperm.xlu0 %572, %v567
    %v574 = vpop.permute.xlu0 %573
    %577 = vset.pattern.permute.xlu0 0
    %578 = vperm.xlu0 %577, %v568
    %v579 = vpop.permute.xlu0 %578
    %582 = vset.pattern.permute.xlu0 0
    %583 = vperm.xlu0 %582, %v569
    %v584 = vpop.permute.xlu0 %583
    %587 = vset.pattern.permute.xlu0 0
    %588 = vperm.xlu0 %587, %v570
    %v589 = vpop.permute.xlu0 %588
    %v591 = vmul.f32 %v565, %v574
    %v592 = vmul.f32 %v564, %v579
    %v593 = vmul.f32 %v563, %v584
    %v594 = vmul.f32 %v562, %v589
    %s595 = scalar_lea.vmem %s17, 3
    %v596 = vld [vmem:[%s595] sm:$0x1]
    %v598 = vperm.slane %v596, 0
    %v600 = vmul.f32 %v591, %v598
    %v601 = vmul.f32 %v592, %v598
    %v602 = vmul.f32 %v593, %v598
    %v603 = vmul.f32 %v594, %v598
    %v604 = vadd.f32 %v553, %v600
    %v605 = vadd.f32 %v554, %v601
    %v606 = vadd.f32 %v555, %v602
    %v607 = vadd.f32 %v556, %v603
    %s608 = scalar_lea.vmem %s11, 128
    %v609 = vld [vmem:[%s608] sm:$0xff]
    %v610 = vld [vmem:[%s608 + $0x8] sm:$0xff]
    %v611 = vld [vmem:[%s608 + $0x10] sm:$0xff]
    %v612 = vld [vmem:[%s608 + $0x18] sm:$0xff]
    %614 = vset.pattern.permute.xlu0 0
    %615 = vperm.xlu0 %614, %v609
    %v616 = vpop.permute.xlu0 %615
    %619 = vset.pattern.permute.xlu0 0
    %620 = vperm.xlu0 %619, %v610
    %v621 = vpop.permute.xlu0 %620
    %624 = vset.pattern.permute.xlu0 0
    %625 = vperm.xlu0 %624, %v611
    %v626 = vpop.permute.xlu0 %625
    %629 = vset.pattern.permute.xlu0 0
    %630 = vperm.xlu0 %629, %v612
    %v631 = vpop.permute.xlu0 %630
    %v633 = vmul.f32 %v400, %v616
    %v634 = vmul.f32 %v401, %v621
    %v635 = vmul.f32 %v402, %v626
    %v636 = vmul.f32 %v403, %v631
    %s637 = scalar_lea.vmem %s17, 4
    %v638 = vld [vmem:[%s637] sm:$0x1]
    %v640 = vperm.slane %v638, 0
    %v642 = vmul.f32 %v633, %v640
    %v643 = vmul.f32 %v634, %v640
    %v644 = vmul.f32 %v635, %v640
    %v645 = vmul.f32 %v636, %v640
    %v646 = vadd.f32 %v604, %v642
    %v647 = vadd.f32 %v605, %v643
    %v648 = vadd.f32 %v606, %v644
    %v649 = vadd.f32 %v607, %v645
    %v650 = vrot.slane %v400, 1
    %v651 = vrot.slane %v401, 1
    %v652 = vrot.slane %v402, 1
    %v653 = vrot.slane %v403, 1
    %vm654 = vcmp.lt.s32.totalorder %v409, 7
    %v655 = vsel %vm654, %v652, %v653
    %v656 = vsel %vm654, %v651, %v652
    %v657 = vsel %vm654, %v650, %v651
    %v658 = vsel %vm654, %v653, %v650
    %s659 = scalar_lea.vmem %s11, 160
    %v660 = vld [vmem:[%s659] sm:$0xff]
    %v661 = vld [vmem:[%s659 + $0x8] sm:$0xff]
    %v662 = vld [vmem:[%s659 + $0x10] sm:$0xff]
    %v663 = vld [vmem:[%s659 + $0x18] sm:$0xff]
    %665 = vset.pattern.permute.xlu0 0
    %666 = vperm.xlu0 %665, %v660
    %v667 = vpop.permute.xlu0 %666
    %670 = vset.pattern.permute.xlu0 0
    %671 = vperm.xlu0 %670, %v661
    %v672 = vpop.permute.xlu0 %671
    %675 = vset.pattern.permute.xlu0 0
    %676 = vperm.xlu0 %675, %v662
    %v677 = vpop.permute.xlu0 %676
    %680 = vset.pattern.permute.xlu0 0
    %681 = vperm.xlu0 %680, %v663
    %v682 = vpop.permute.xlu0 %681
    %v684 = vmul.f32 %v657, %v667
    %v685 = vmul.f32 %v656, %v672
    %v686 = vmul.f32 %v655, %v677
    %v687 = vmul.f32 %v658, %v682
    %s688 = scalar_lea.vmem %s17, 5
    %v689 = vld [vmem:[%s688] sm:$0x1]
    %v691 = vperm.slane %v689, 0
    %v693 = vmul.f32 %v684, %v691
    %v694 = vmul.f32 %v685, %v691
    %v695 = vmul.f32 %v686, %v691
    %v696 = vmul.f32 %v687, %v691
    %v697 = vadd.f32 %v646, %v693
    %v698 = vadd.f32 %v647, %v694
    %v699 = vadd.f32 %v648, %v695
    %v700 = vadd.f32 %v649, %v696
    %s701 = scalar_lea.vmem %s11, 192
    %v702 = vld [vmem:[%s701] sm:$0xff]
    %v703 = vld [vmem:[%s701 + $0x8] sm:$0xff]
    %v704 = vld [vmem:[%s701 + $0x10] sm:$0xff]
    %v705 = vld [vmem:[%s701 + $0x18] sm:$0xff]
    %707 = vset.pattern.permute.xlu0 0
    %708 = vperm.xlu0 %707, %v702
    %v709 = vpop.permute.xlu0 %708
    %712 = vset.pattern.permute.xlu0 0
    %713 = vperm.xlu0 %712, %v703
    %v714 = vpop.permute.xlu0 %713
    %717 = vset.pattern.permute.xlu0 0
    %718 = vperm.xlu0 %717, %v704
    %v719 = vpop.permute.xlu0 %718
    %722 = vset.pattern.permute.xlu0 0
    %723 = vperm.xlu0 %722, %v705
    %v724 = vpop.permute.xlu0 %723
    %v726 = vmul.f32 %v413, %v709
    %v727 = vmul.f32 %v412, %v714
    %v728 = vmul.f32 %v411, %v719
    %v729 = vmul.f32 %v414, %v724
    %s730 = scalar_lea.vmem %s17, 6
    %v731 = vld [vmem:[%s730] sm:$0x1]
    %v733 = vperm.slane %v731, 0
    %v735 = vmul.f32 %v726, %v733
    %v736 = vmul.f32 %v727, %v733
    %v737 = vmul.f32 %v728, %v733
    %v738 = vmul.f32 %v729, %v733
    %v739 = vadd.f32 %v697, %v735
    %v740 = vadd.f32 %v698, %v736
    %v741 = vadd.f32 %v699, %v737
    %v742 = vadd.f32 %v700, %v738
    %s743 = scalar_lea.vmem %s11, 224
    %v744 = vld [vmem:[%s743] sm:$0xff]
    %v745 = vld [vmem:[%s743 + $0x8] sm:$0xff]
    %v746 = vld [vmem:[%s743 + $0x10] sm:$0xff]
    %v747 = vld [vmem:[%s743 + $0x18] sm:$0xff]
    %749 = vset.pattern.permute.xlu0 0
    %750 = vperm.xlu0 %749, %v744
    %v751 = vpop.permute.xlu0 %750
    %754 = vset.pattern.permute.xlu0 0
    %755 = vperm.xlu0 %754, %v745
    %v756 = vpop.permute.xlu0 %755
    %759 = vset.pattern.permute.xlu0 0
    %760 = vperm.xlu0 %759, %v746
    %v761 = vpop.permute.xlu0 %760
    %764 = vset.pattern.permute.xlu0 0
    %765 = vperm.xlu0 %764, %v747
    %v766 = vpop.permute.xlu0 %765
    %v768 = vmul.f32 %v462, %v751
    %v769 = vmul.f32 %v461, %v756
    %v770 = vmul.f32 %v460, %v761
    %v771 = vmul.f32 %v463, %v766
    %s772 = scalar_lea.vmem %s17, 7
    %v773 = vld [vmem:[%s772] sm:$0x1]
    %v775 = vperm.slane %v773, 0
    %v777 = vmul.f32 %v768, %v775
    %v778 = vmul.f32 %v769, %v775
    %v779 = vmul.f32 %v770, %v775
    %v780 = vmul.f32 %v771, %v775
    %v781 = vadd.f32 %v739, %v777
    %v782 = vadd.f32 %v740, %v778
    %v783 = vadd.f32 %v741, %v779
    %v784 = vadd.f32 %v742, %v780
    %s785 = scalar_lea.vmem %s11, 256
    %v786 = vld [vmem:[%s785] sm:$0xff]
    %v787 = vld [vmem:[%s785 + $0x8] sm:$0xff]
    %v788 = vld [vmem:[%s785 + $0x10] sm:$0xff]
    %v789 = vld [vmem:[%s785 + $0x18] sm:$0xff]
    %791 = vset.pattern.permute.xlu0 0
    %792 = vperm.xlu0 %791, %v786
    %v793 = vpop.permute.xlu0 %792
    %796 = vset.pattern.permute.xlu0 0
    %797 = vperm.xlu0 %796, %v787
    %v798 = vpop.permute.xlu0 %797
    %801 = vset.pattern.permute.xlu0 0
    %802 = vperm.xlu0 %801, %v788
    %v803 = vpop.permute.xlu0 %802
    %806 = vset.pattern.permute.xlu0 0
    %807 = vperm.xlu0 %806, %v789
    %v808 = vpop.permute.xlu0 %807
    %v810 = vmul.f32 %v513, %v793
    %v811 = vmul.f32 %v512, %v798
    %v812 = vmul.f32 %v511, %v803
    %v813 = vmul.f32 %v514, %v808
    %s814 = scalar_lea.vmem %s17, 8
    %v815 = vld [vmem:[%s814] sm:$0x1]
    %v817 = vperm.slane %v815, 0
    %v819 = vmul.f32 %v810, %v817
    %v820 = vmul.f32 %v811, %v817
    %v821 = vmul.f32 %v812, %v817
    %v822 = vmul.f32 %v813, %v817
    %v823 = vadd.f32 %v781, %v819
    %v824 = vadd.f32 %v782, %v820
    %v825 = vadd.f32 %v783, %v821
    %v826 = vadd.f32 %v784, %v822
    %v827 = vld [vmem:[%s19] sm:$0x1]
    %v829 = vperm.slane %v827, 0
    %v831 = vadd.f32 %v823, %v829
    %v832 = vadd.f32 %v824, %v829
    %v833 = vadd.f32 %v825, %v829
    %v834 = vadd.f32 %v826, %v829
    %v835 = vmul.f32 %v831, %v831
    %v836 = vmul.f32 %v832, %v832
    %v837 = vmul.f32 %v833, %v833
    %v838 = vmul.f32 %v834, %v834
    %v839 = vmul.f32 %v831, %v835
    %v840 = vmul.f32 %v832, %v836
    %v841 = vmul.f32 %v833, %v837
    %v842 = vmul.f32 %v834, %v838
    %v843 = vmul.f32 %v839, 0.044715
    %v844 = vmul.f32 %v840, 0.044715
    %v845 = vmul.f32 %v841, 0.044715
    %v846 = vmul.f32 %v842, 0.044715
    %v847 = vadd.f32 %v831, %v843
    %v848 = vadd.f32 %v832, %v844
    %v849 = vadd.f32 %v833, %v845
    %v850 = vadd.f32 %v834, %v846
    %v851 = vmul.f32 %v847, 0.7978846
    %v852 = vmul.f32 %v848, 0.7978846
    %v853 = vmul.f32 %v849, 0.7978846
    %v854 = vmul.f32 %v850, 0.7978846
    %v855 = vtanh.pop %v851
    %v856 = vtanh.pop %v852
    %v857 = vtanh.pop %v853
    %v858 = vtanh.pop %v854
    %v859 = vadd.f32 %v855, 1.0
    %v860 = vadd.f32 %v856, 1.0
    %v861 = vadd.f32 %v857, 1.0
    %v862 = vadd.f32 %v858, 1.0
    %v863 = vmul.f32 %v859, 0.5
    %v864 = vmul.f32 %v860, 0.5
    %v865 = vmul.f32 %v861, 0.5
    %v866 = vmul.f32 %v862, 0.5
    %v867 = vmul.f32 %v831, %v863
    %v868 = vmul.f32 %v832, %v864
    %v869 = vmul.f32 %v833, %v865
    %v870 = vmul.f32 %v834, %v866
    %v871 = vld [vmem:[%s21] sm:$0xf]
    %v872 = vld [vmem:[%s21 + $0x4] sm:$0xf]
    %v873 = vpack.c.bf16 %v868, %v867
    %v874 = vpack.c.bf16 %v870, %v869
    %v877 = vunpack.c.l.b16 %v871
    %v878 = vunpack.c.l.b16 %v872
    %v879 = vpack.c.b16 %v878, %v877
    %vm881 = vcmask 130048
    %v883 = vsel %vm881, %v873, 0
    %v886 = vsel %vm881, %v874, 0
    %888 = vmatpush.bf16.msra.mxu0 0
    %889 = vmatpush.bf16.msra.mxu0 0
    %890 = vmatpush.bf16.msra.mxu0 0
    %891 = vmatpush.bf16.msra.mxu0 0
    %892 = vmatpush.bf16.msra.mxu0 0
    %893 = vmatpush.bf16.msra.mxu0 0
    %894 = vmatpush.bf16.msra.mxu0 0
    %895 = vmatpush.bf16.msra.mxu0 %v879
    %896 = vmatmul.bf16.gmra.mxu0 %v883
    %v897 = vpop.f32.mrf.mxu0
    %v898 = vadd.f32 0.0, %v897
    %v899 = vpop.f32.mrf.mxu0
    %v900 = vadd.f32 0.0, %v899
    %901 = vmatmul.bf16.gmra.mxu0 %v886
    %v902 = vpop.f32.mrf.mxu0
    %v903 = vadd.f32 0.0, %v902
    %v904 = vpop.f32.mrf.mxu0
    %v905 = vadd.f32 0.0, %v904
    %906 = vdwg.mxu0
    %v907 = vadd.f32 %v328, %v898
    %v908 = vadd.f32 %v329, %v900
    %v909 = vadd.f32 %v330, %v903
    %v910 = vadd.f32 %v331, %v905
    %v911 = vld [vmem:[%s23] sm:$0x1]
    %v913 = vperm.slane %v911, 0
    %v915 = vadd.f32 %v907, %v913
    %v916 = vadd.f32 %v908, %v913
    %v917 = vadd.f32 %v909, %v913
    %v918 = vadd.f32 %v910, %v913
    %v919 = vld [vmem:[%s25] sm:$0xf]
    %v920 = vpack.c.bf16 %v916, %v915
    %v921 = vpack.c.bf16 %v918, %v917
    %vm922 = vcmask 261120
    %v924 = vsel %vm922, %v919, 0
    %926 = vmatpush.bf16.msra.mxu0 0
    %927 = vmatpush.bf16.msra.mxu0 0
    %928 = vmatpush.bf16.msra.mxu0 0
    %929 = vmatpush.bf16.msra.mxu0 0
    %930 = vmatpush.bf16.msra.mxu0 0
    %931 = vmatpush.bf16.msra.mxu0 0
    %932 = vmatpush.bf16.msra.mxu0 %v921
    %933 = vmatpush.bf16.msra.mxu0 %v920
    %934 = vmatmul.bf16.gmra.mxu0 %v924
    %v935 = vpop.f32.mrf.mxu0
    %v936 = vadd.f32 0.0, %v935
    %v937 = vpop.f32.mrf.mxu0
    %938 = vdwg.mxu0
    %s939 = scalar_lea.vmem %s25, 4
    %v940 = vld [vmem:[%s939] sm:$0xf]
    %v942 = vsel %vm922, %v940, 0
    %944 = vmatpush.bf16.msra.mxu0 0
    %945 = vmatpush.bf16.msra.mxu0 0
    %946 = vmatpush.bf16.msra.mxu0 0
    %947 = vmatpush.bf16.msra.mxu0 0
    %948 = vmatpush.bf16.msra.mxu0 0
    %949 = vmatpush.bf16.msra.mxu0 0
    %950 = vmatpush.bf16.msra.mxu0 %v921
    %951 = vmatpush.bf16.msra.mxu0 %v920
    %952 = vmatmul.bf16.gmra.mxu0 %v942
    %v953 = vpop.f32.mrf.mxu0
    %v954 = vadd.f32 0.0, %v953
    %v955 = vpop.f32.mrf.mxu0
    %956 = vdwg.mxu0
    %s957 = scalar_lea.vmem %s25, 8
    %v958 = vld [vmem:[%s957] sm:$0xf]
    %v960 = vsel %vm922, %v958, 0
    %962 = vmatpush.bf16.msra.mxu0 0
    %963 = vmatpush.bf16.msra.mxu0 0
    %964 = vmatpush.bf16.msra.mxu0 0
    %965 = vmatpush.bf16.msra.mxu0 0
    %966 = vmatpush.bf16.msra.mxu0 0
    %967 = vmatpush.bf16.msra.mxu0 0
    %968 = vmatpush.bf16.msra.mxu0 %v921
    %969 = vmatpush.bf16.msra.mxu0 %v920
    %970 = vmatmul.bf16.gmra.mxu0 %v960
    %v971 = vpop.f32.mrf.mxu0
    %v972 = vadd.f32 0.0, %v971
    %v973 = vpop.f32.mrf.mxu0
    %974 = vdwg.mxu0
    %s975 = scalar_lea.vmem %s25, 12
    %v976 = vld [vmem:[%s975] sm:$0xf]
    %v978 = vsel %vm922, %v976, 0
    %980 = vmatpush.bf16.msra.mxu0 0
    %981 = vmatpush.bf16.msra.mxu0 0
    %982 = vmatpush.bf16.msra.mxu0 0
    %983 = vmatpush.bf16.msra.mxu0 0
    %984 = vmatpush.bf16.msra.mxu0 0
    %985 = vmatpush.bf16.msra.mxu0 0
    %986 = vmatpush.bf16.msra.mxu0 %v921
    %987 = vmatpush.bf16.msra.mxu0 %v920
    %988 = vmatmul.bf16.gmra.mxu0 %v978
    %v989 = vpop.f32.mrf.mxu0
    %v990 = vadd.f32 0.0, %v989
    %v991 = vpop.f32.mrf.mxu0
    %992 = vdwg.mxu0
    %v993 = vsel %vm222, %v936, 0.0
    %994 = vadd.xlane.f32.xlu0 %v993
    %v995 = vpop.xlane.xlu0 %994
    %v996 = vadd.f32 %v995, 0.0
    %v997 = vsel %vm222, %v954, 0.0
    %998 = vadd.xlane.f32.xlu0 %v997
    %v999 = vpop.xlane.xlu0 %998
    %v1000 = vadd.f32 %v996, %v999
    %v1001 = vsel %vm222, %v972, 0.0
    %1002 = vadd.xlane.f32.xlu0 %v1001
    %v1003 = vpop.xlane.xlu0 %1002
    %v1004 = vadd.f32 %v1000, %v1003
    %v1005 = vsel %vm222, %v990, 0.0
    %1006 = vadd.xlane.f32.xlu0 %v1005
    %v1007 = vpop.xlane.xlu0 %1006
    %v1008 = vadd.f32 %v1004, %v1007
    %v1009 = vmul.f32 %v936, %v936
    %v1010 = vsel %vm222, %v1009, 0.0
    %1011 = vadd.xlane.f32.xlu0 %v1010
    %v1012 = vpop.xlane.xlu0 %1011
    %v1013 = vadd.f32 %v1012, 0.0
    %v1014 = vmul.f32 %v954, %v954
    %v1015 = vsel %vm222, %v1014, 0.0
    %1016 = vadd.xlane.f32.xlu0 %v1015
    %v1017 = vpop.xlane.xlu0 %1016
    %v1018 = vadd.f32 %v1013, %v1017
    %v1019 = vmul.f32 %v972, %v972
    %v1020 = vsel %vm222, %v1019, 0.0
    %1021 = vadd.xlane.f32.xlu0 %v1020
    %v1022 = vpop.xlane.xlu0 %1021
    %v1023 = vadd.f32 %v1018, %v1022
    %v1024 = vmul.f32 %v990, %v990
    %v1025 = vsel %vm222, %v1024, 0.0
    %1026 = vadd.xlane.f32.xlu0 %v1025
    %v1027 = vpop.xlane.xlu0 %1026
    %v1028 = vadd.f32 %v1023, %v1027
    %v1029 = vrcp.pop 32.0
    %v1030 = vmul.f32 32.0, %v1029
    %v1031 = vsub.f32 1.0, %v1030
    %v1032 = vmul.f32 %v1029, %v1031
    %v1033 = vadd.f32 %v1029, %v1032
    %vm1034 = vweird.f32 %v1029
    %v1035 = vsel %vm1034, %v1029, %v1033
    %v1036 = vmul.f32 %v1008, %v1035
    %v1037 = vmul.f32 %v1028, %v1035
    %v1038 = vmul.f32 %v1036, %v1036
    %v1039 = vsub.f32 %v1037, %v1038
    %v1040 = vadd.f32 %v1039, 1e-05
    %v1041 = vrsqrt.pop %v1040
    %v1042 = vmul.f32 %v1041, %v1040
    %v1043 = vmul.f32 %v1042, %v1041
    %v1044 = vmul.f32 0.5, %v1043
    %v1045 = vsub.f32 1.5, %v1044
    %v1046 = vmul.f32 %v1041, %v1045
    %vm1047 = vweird.f32 %v1040
    %vm1048 = vweird.f32 %v1041
    %vm1049 = vmor %vm1047, %vm1048
    %v1050 = vsel %vm1049, %v1041, %v1046
    %v1051 = vld [vmem:[%s31] sm:$0x1]
    %v1052 = vsub.f32 %v936, %v1036
    %v1053 = vmul.f32 %v1052, %v1050
    %v1054 = vld [vmem:[%s27] sm:$0x1]
    %v1056 = vperm.slane %v1054, 0
    %v1058 = vmul.f32 %v1053, %v1056
    %v1059 = vld [vmem:[%s29] sm:$0xf]
    %v1060 = vpack.c.bf16 %v1058, %v1058
    %v1061 = vsub.f32 %v954, %v1036
    %v1062 = vmul.f32 %v1061, %v1050
    %s1063 = scalar_lea.vmem %s27, 1
    %v1064 = vld [vmem:[%s1063] sm:$0x1]
    %v1066 = vperm.slane %v1064, 0
    %v1068 = vmul.f32 %v1062, %v1066
    %s1069 = scalar_lea.vmem %s29, 4
    %v1070 = vld [vmem:[%s1069] sm:$0xf]
    %v1071 = vpack.c.bf16 %v1068, %v1068
    %v1073 = vsel %vm222, %v1071, 0
    %v1076 = vsel %vm345, %v1070, 0
    %1078 = vmatpush.bf16.msra.mxu0 0
    %1079 = vmatpush.bf16.msra.mxu0 0
    %1080 = vmatpush.bf16.msra.mxu0 0
    %1081 = vmatpush.bf16.msra.mxu0 0
    %1082 = vmatpush.bf16.msra.mxu0 0
    %1083 = vmatpush.bf16.msra.mxu0 0
    %1084 = vmatpush.bf16.msra.mxu0 0
    %1085 = vmatpush.bf16.msra.mxu0 %v1076
    %1086 = vmatmul.bf16.gmra.mxu0 %v1073
    %v1087 = vpop.f32.mrf.mxu0
    %v1088 = vadd.f32 0.0, %v1087
    %v1089 = vpop.f32.mrf.mxu0
    %1090 = vdwg.mxu0
    %v1092 = vsel %vm222, %v1060, 0
    %v1095 = vsel %vm345, %v1059, 0
    %1097 = vmatpush.bf16.msra.mxu0 0
    %1098 = vmatpush.bf16.msra.mxu0 0
    %1099 = vmatpush.bf16.msra.mxu0 0
    %1100 = vmatpush.bf16.msra.mxu0 0
    %1101 = vmatpush.bf16.msra.mxu0 0
    %1102 = vmatpush.bf16.msra.mxu0 0
    %1103 = vmatpush.bf16.msra.mxu0 0
    %1104 = vmatpush.bf16.msra.mxu0 %v1095
    %1105 = vmatmul.bf16.gmra.mxu0 %v1092
    %v1106 = vpop.f32.mrf.mxu0
    %v1107 = vadd.f32 %v1088, %v1106
    %v1108 = vpop.f32.mrf.mxu0
    %1109 = vdwg.mxu0
    %v1110 = vsub.f32 %v972, %v1036
    %v1111 = vmul.f32 %v1110, %v1050
    %s1112 = scalar_lea.vmem %s27, 2
    %v1113 = vld [vmem:[%s1112] sm:$0x1]
    %v1115 = vperm.slane %v1113, 0
    %v1117 = vmul.f32 %v1111, %v1115
    %s1118 = scalar_lea.vmem %s29, 8
    %v1119 = vld [vmem:[%s1118] sm:$0xf]
    %v1120 = vpack.c.bf16 %v1117, %v1117
    %v1122 = vsel %vm222, %v1120, 0
    %v1125 = vsel %vm345, %v1119, 0
    %1127 = vmatpush.bf16.msra.mxu0 0
    %1128 = vmatpush.bf16.msra.mxu0 0
    %1129 = vmatpush.bf16.msra.mxu0 0
    %1130 = vmatpush.bf16.msra.mxu0 0
    %1131 = vmatpush.bf16.msra.mxu0 0
    %1132 = vmatpush.bf16.msra.mxu0 0
    %1133 = vmatpush.bf16.msra.mxu0 0
    %1134 = vmatpush.bf16.msra.mxu0 %v1125
    %1135 = vmatmul.bf16.gmra.mxu0 %v1122
    %v1136 = vpop.f32.mrf.mxu0
    %v1137 = vadd.f32 0.0, %v1136
    %v1138 = vpop.f32.mrf.mxu0
    %1139 = vdwg.mxu0
    %v1140 = vadd.f32 %v1107, %v1137
    %v1141 = vsub.f32 %v990, %v1036
    %v1142 = vmul.f32 %v1141, %v1050
    %s1143 = scalar_lea.vmem %s27, 3
    %v1144 = vld [vmem:[%s1143] sm:$0x1]
    %v1146 = vperm.slane %v1144, 0
    %v1148 = vmul.f32 %v1142, %v1146
    %s1149 = scalar_lea.vmem %s29, 12
    %v1150 = vld [vmem:[%s1149] sm:$0xf]
    %v1151 = vpack.c.bf16 %v1148, %v1148
    %v1153 = vsel %vm222, %v1151, 0
    %v1156 = vsel %vm345, %v1150, 0
    %1158 = vmatpush.bf16.msra.mxu0 0
    %1159 = vmatpush.bf16.msra.mxu0 0
    %1160 = vmatpush.bf16.msra.mxu0 0
    %1161 = vmatpush.bf16.msra.mxu0 0
    %1162 = vmatpush.bf16.msra.mxu0 0
    %1163 = vmatpush.bf16.msra.mxu0 0
    %1164 = vmatpush.bf16.msra.mxu0 0
    %1165 = vmatpush.bf16.msra.mxu0 %v1156
    %1166 = vmatmul.bf16.gmra.mxu0 %v1153
    %v1167 = vpop.f32.mrf.mxu0
    %v1168 = vadd.f32 0.0, %v1167
    %v1169 = vpop.f32.mrf.mxu0
    %1170 = vdwg.mxu0
    %v1171 = vadd.f32 %v1140, %v1168
    %v1173 = vperm.slane %v1051, 0
    %v1175 = vadd.f32 %v1173, %v1171
    %v1176 = vld [vmem:[%s33] sm:$0xff]
    %v1177 = vld [vmem:[%s35] sm:$0x1]
    %v1178 = vld [vmem:[%s37] sm:$0x1]
    %v1179 = vsel %vm881, %v1175, 0.0
    %1180 = vadd.xlane.f32.xlu0 %v1179
    %v1181 = vpop.xlane.xlu0 %1180
    %v1182 = vrcp.pop 16.0
    %v1183 = vmul.f32 16.0, %v1182
    %v1184 = vsub.f32 1.0, %v1183
    %v1185 = vmul.f32 %v1182, %v1184
    %v1186 = vadd.f32 %v1182, %v1185
    %vm1187 = vweird.f32 %v1182
    %v1188 = vsel %vm1187, %v1182, %v1186
    %v1189 = vmul.f32 %v1181, %v1188
    %v1190 = vsub.f32 %v1175, %v1189
    %v1191 = vmul.f32 %v1190, %v1190
    %v1192 = vsel %vm881, %v1191, 0.0
    %1193 = vadd.xlane.f32.xlu0 %v1192
    %v1194 = vpop.xlane.xlu0 %1193
    %v1195 = vmul.f32 %v1194, %v1188
    %v1196 = vadd.f32 %v1195, 1e-05
    %v1197 = vrsqrt.pop %v1196
    %v1198 = vmul.f32 %v1197, %v1196
    %v1199 = vmul.f32 %v1198, %v1197
    %v1200 = vmul.f32 0.5, %v1199
    %v1201 = vsub.f32 1.5, %v1200
    %v1202 = vmul.f32 %v1197, %v1201
    %vm1203 = vweird.f32 %v1196
    %vm1204 = vweird.f32 %v1197
    %vm1205 = vmor %vm1203, %vm1204
    %v1206 = vsel %vm1205, %v1197, %v1202
    %v1207 = vmul.f32 %v1190, %v1206
    %v1209 = vperm.slane %v1177, 0
    %v1211 = vmul.f32 %v1207, %v1209
    %v1213 = vperm.slane %v1178, 0
    %v1215 = vadd.f32 %v1211, %v1213
    %v1216 = vld [vmem:[%s39] sm:$0xf]
    %v1217 = vld [vmem:[%s39 + $0x4] sm:$0xf]
    %v1218 = vpack.c.bf16 %v1215, %v1215
    %v1219 = vld [vmem:[%s41] sm:$0x1]
    %v1221 = vperm.slane %v1219, 0
    %v1225 = vunpack.c.l.b16 %v1216
    %v1226 = vunpack.c.l.b16 %v1217
    %v1227 = vpack.c.b16 %v1226, %v1225
    %v1230 = vsel %vm881, %v1218, 0
    %1232 = vmatpush.bf16.msra.mxu0 0
    %1233 = vmatpush.bf16.msra.mxu0 0
    %1234 = vmatpush.bf16.msra.mxu0 0
    %1235 = vmatpush.bf16.msra.mxu0 0
    %1236 = vmatpush.bf16.msra.mxu0 0
    %1237 = vmatpush.bf16.msra.mxu0 0
    %1238 = vmatpush.bf16.msra.mxu0 0
    %1239 = vmatpush.bf16.msra.mxu0 %v1227
    %1240 = vmatmul.bf16.gmra.mxu0 %v1230
    %v1241 = vpop.f32.mrf.mxu0
    %v1242 = vadd.f32 %v1221, %v1241
    %v1243 = vpop.f32.mrf.mxu0
    %1244 = vdwg.mxu0
    %v1245 = vld [vmem:[%s43] sm:$0xf]
    %v1246 = vld [vmem:[%s43 + $0x4] sm:$0xf]
    %v1247 = vpack.c.bf16 %v1242, %v1242
    %1249 = vrot.lane.b32.xlu0 %v1247, 112
    %v1250 = vpop.permute.xlu0 %1249
    %v1252 = vsel %vm222, %v1247, 0
    %v1255 = vsel %vm222, %v1250, 0
    %1257 = vmatpush.bf16.xpose.msra.mxu0 0
    %1258 = vmatpush.bf16.xpose.msra.mxu0 0
    %1259 = vmatpush.bf16.xpose.msra.mxu0 0
    %1260 = vmatpush.bf16.xpose.msra.mxu0 0
    %1261 = vmatpush.bf16.xpose.msra.mxu0 0
    %1262 = vmatpush.bf16.xpose.msra.mxu0 0
    %1263 = vmatpush.bf16.xpose.msra.mxu0 0
    %1264 = vmatpush.bf16.xpose.msra.mxu0 %v1255
    %1265 = vmatmul.bf16.gmra.mxu0 %v1252
    %v1266 = vpop.f32.mrf.mxu0
    %v1267 = vadd.f32 0.0, %v1266
    %v1268 = vpop.f32.mrf.mxu0
    %1269 = vdwg.mxu0
    %v1270 = vmul.f32 %v1267, 0.35355338
    %v1271 = vadd.f32 %v1270, %v1176
    %v1272 = vsel %vm222, %v1271, -inf
    %1273 = vmax.xlane.f32.xlu0 %v1272
    %v1274 = vpop.xlane.xlu0 %1273
    %v1275 = vsub.f32 %v1271, %v1274
    %v1276 = vmul.f32 %v1275, 1.442695
    %v1277 = vpow.pop %v1276
    %v1278 = vsel %vm222, %v1277, 0.0
    %1279 = vadd.xlane.f32.xlu0 %v1278
    %v1280 = vpop.xlane.xlu0 %1279
    %v1281 = vrcp.pop %v1280
    %v1282 = vmul.f32 %v1280, %v1281
    %v1283 = vsub.f32 1.0, %v1282
    %v1284 = vmul.f32 %v1281, %v1283
    %v1285 = vadd.f32 %v1281, %v1284
    %vm1286 = vweird.f32 %v1280
    %vm1287 = vweird.f32 %v1281
    %vm1288 = vmor %vm1286, %vm1287
    %v1289 = vsel %vm1288, %v1281, %v1285
    %v1290 = vand.u32 2147483647, %v1280
    %vm1291 = vcmp.eq.f32.partialorder %v1290, 8.507059e+37
    %v1292 = vand.u32 %v1280, 2147483648
    %v1293 = vor.u32 1.1754944e-38, %v1292
    %v1294 = vsel %vm1291, %v1293, %v1289
    %v1295 = vmul.f32 %v1277, %v1294
    %v1296 = vpack.c.bf16 %v1295, %v1295
    %1297 = vrot.lane.b32.xlu0 %v1247, 96
    %v1298 = vpop.permute.xlu0 %1297
    %v1300 = vsel %vm222, %v1296, 0
    %v1303 = vsel %vm345, %v1298, 0
    %1305 = vmatpush.bf16.msra.mxu0 0
    %1306 = vmatpush.bf16.msra.mxu0 0
    %1307 = vmatpush.bf16.msra.mxu0 0
    %1308 = vmatpush.bf16.msra.mxu0 0
    %1309 = vmatpush.bf16.msra.mxu0 0
    %1310 = vmatpush.bf16.msra.mxu0 0
    %1311 = vmatpush.bf16.msra.mxu0 0
    %1312 = vmatpush.bf16.msra.mxu0 %v1303
    %1313 = vmatmul.bf16.gmra.mxu0 %v1300
    %v1314 = vpop.f32.mrf.mxu0
    %v1315 = vadd.f32 0.0, %v1314
    %v1316 = vpop.f32.mrf.mxu0
    %1317 = vdwg.mxu0
    %v1318 = vpack.c.bf16 %v1315, %v1315
    %1319 = vrot.lane.b32.xlu0 %v1247, 120
    %v1320 = vpop.permute.xlu0 %1319
    %1321 = vrot.lane.b32.xlu0 %v1247, 104
    %v1322 = vpop.permute.xlu0 %1321
    %v1324 = vsel %vm222, %v1320, 0
    %v1327 = vsel %vm222, %v1322, 0
    %1329 = vmatpush.bf16.xpose.msra.mxu0 0
    %1330 = vmatpush.bf16.xpose.msra.mxu0 0
    %1331 = vmatpush.bf16.xpose.msra.mxu0 0
    %1332 = vmatpush.bf16.xpose.msra.mxu0 0
    %1333 = vmatpush.bf16.xpose.msra.mxu0 0
    %1334 = vmatpush.bf16.xpose.msra.mxu0 0
    %1335 = vmatpush.bf16.xpose.msra.mxu0 0
    %1336 = vmatpush.bf16.xpose.msra.mxu0 %v1327
    %1337 = vmatmul.bf16.gmra.mxu0 %v1324
    %v1338 = vpop.f32.mrf.mxu0
    %v1339 = vadd.f32 0.0, %v1338
    %v1340 = vpop.f32.mrf.mxu0
    %1341 = vdwg.mxu0
    %v1342 = vmul.f32 %v1339, 0.35355338
    %v1343 = vadd.f32 %v1342, %v1176
    %v1344 = vsel %vm222, %v1343, -inf
    %1345 = vmax.xlane.f32.xlu0 %v1344
    %v1346 = vpop.xlane.xlu0 %1345
    %v1347 = vsub.f32 %v1343, %v1346
    %v1348 = vmul.f32 %v1347, 1.442695
    %v1349 = vpow.pop %v1348
    %v1350 = vsel %vm222, %v1349, 0.0
    %1351 = vadd.xlane.f32.xlu0 %v1350
    %v1352 = vpop.xlane.xlu0 %1351
    %v1353 = vrcp.pop %v1352
    %v1354 = vmul.f32 %v1352, %v1353
    %v1355 = vsub.f32 1.0, %v1354
    %v1356 = vmul.f32 %v1353, %v1355
    %v1357 = vadd.f32 %v1353, %v1356
    %vm1358 = vweird.f32 %v1352
    %vm1359 = vweird.f32 %v1353
    %vm1360 = vmor %vm1358, %vm1359
    %v1361 = vsel %vm1360, %v1353, %v1357
    %v1362 = vand.u32 2147483647, %v1352
    %vm1363 = vcmp.eq.f32.partialorder %v1362, 8.507059e+37
    %v1364 = vand.u32 %v1352, 2147483648
    %v1365 = vor.u32 1.1754944e-38, %v1364
    %v1366 = vsel %vm1363, %v1365, %v1361
    %v1367 = vmul.f32 %v1349, %v1366
    %v1368 = vpack.c.bf16 %v1367, %v1367
    %1369 = vrot.lane.b32.xlu0 %v1247, 88
    %v1370 = vpop.permute.xlu0 %1369
    %v1372 = vsel %vm222, %v1368, 0
    %v1375 = vsel %vm345, %v1370, 0
    %1377 = vmatpush.bf16.msra.mxu0 0
    %1378 = vmatpush.bf16.msra.mxu0 0
    %1379 = vmatpush.bf16.msra.mxu0 0
    %1380 = vmatpush.bf16.msra.mxu0 0
    %1381 = vmatpush.bf16.msra.mxu0 0
    %1382 = vmatpush.bf16.msra.mxu0 0
    %1383 = vmatpush.bf16.msra.mxu0 0
    %1384 = vmatpush.bf16.msra.mxu0 %v1375
    %1385 = vmatmul.bf16.gmra.mxu0 %v1372
    %v1386 = vpop.f32.mrf.mxu0
    %v1387 = vadd.f32 0.0, %v1386
    %v1388 = vpop.f32.mrf.mxu0
    %1389 = vdwg.mxu0
    %v1390 = vpack.c.bf16 %v1387, %v1387
    %v1392 = vsel %vm222, %v1390, 0
    %v1395 = vsel %vm345, %v1246, 0
    %1397 = vmatpush.bf16.msra.mxu0 0
    %1398 = vmatpush.bf16.msra.mxu0 0
    %1399 = vmatpush.bf16.msra.mxu0 0
    %1400 = vmatpush.bf16.msra.mxu0 0
    %1401 = vmatpush.bf16.msra.mxu0 0
    %1402 = vmatpush.bf16.msra.mxu0 0
    %1403 = vmatpush.bf16.msra.mxu0 0
    %1404 = vmatpush.bf16.msra.mxu0 %v1395
    %1405 = vmatmul.bf16.gmra.mxu0 %v1392
    %v1406 = vpop.f32.mrf.mxu0
    %v1407 = vadd.f32 0.0, %v1406
    %v1408 = vpop.f32.mrf.mxu0
    %1409 = vdwg.mxu0
    %v1411 = vsel %vm222, %v1318, 0
    %v1414 = vsel %vm345, %v1245, 0
    %1416 = vmatpush.bf16.msra.mxu0 0
    %1417 = vmatpush.bf16.msra.mxu0 0
    %1418 = vmatpush.bf16.msra.mxu0 0
    %1419 = vmatpush.bf16.msra.mxu0 0
    %1420 = vmatpush.bf16.msra.mxu0 0
    %1421 = vmatpush.bf16.msra.mxu0 0
    %1422 = vmatpush.bf16.msra.mxu0 0
    %1423 = vmatpush.bf16.msra.mxu0 %v1414
    %1424 = vmatmul.bf16.gmra.mxu0 %v1411
    %v1425 = vpop.f32.mrf.mxu0
    %v1426 = vadd.f32 %v1407, %v1425
    %v1427 = vpop.f32.mrf.mxu0
    %1428 = vdwg.mxu0
    %v1429 = vld [vmem:[%s47] sm:$0x1]
    %v1430 = vld [vmem:[%s45] sm:$0x1]
    %v1432 = vperm.slane %v1430, 0
    %v1434 = vadd.f32 %v1426, %v1432
    %v1436 = vperm.slane %v1429, 0
    %v1438 = vmul.f32 %v1436, %v1434
    %v1439 = vadd.f32 %v1175, %v1438
    %v1440 = vld [vmem:[%s49] sm:$0x1]
    %v1441 = vld [vmem:[%s51] sm:$0x1]
    %v1442 = vsel %vm881, %v1439, 0.0
    %1443 = vadd.xlane.f32.xlu0 %v1442
    %v1444 = vpop.xlane.xlu0 %1443
    %v1445 = vmul.f32 %v1444, %v1188
    %v1446 = vsub.f32 %v1439, %v1445
    %v1447 = vmul.f32 %v1446, %v1446
    %v1448 = vsel %vm881, %v1447, 0.0
    %1449 = vadd.xlane.f32.xlu0 %v1448
    %v1450 = vpop.xlane.xlu0 %1449
    %v1451 = vmul.f32 %v1450, %v1188
    %v1452 = vadd.f32 %v1451, 1e-05
    %v1453 = vrsqrt.pop %v1452
    %v1454 = vmul.f32 %v1453, %v1452
    %v1455 = vmul.f32 %v1454, %v1453
    %v1456 = vmul.f32 0.5, %v1455
    %v1457 = vsub.f32 1.5, %v1456
    %v1458 = vmul.f32 %v1453, %v1457
    %vm1459 = vweird.f32 %v1452
    %vm1460 = vweird.f32 %v1453
    %vm1461 = vmor %vm1459, %vm1460
    %v1462 = vsel %vm1461, %v1453, %v1458
    %v1463 = vmul.f32 %v1446, %v1462
    %v1465 = vperm.slane %v1440, 0
    %v1467 = vmul.f32 %v1463, %v1465
    %v1469 = vperm.slane %v1441, 0
    %v1471 = vadd.f32 %v1467, %v1469
    %v1472 = vld [vmem:[%s53] sm:$0xf]
    %v1473 = vld [vmem:[%s53 + $0x4] sm:$0xf]
    %v1474 = vpack.c.bf16 %v1471, %v1471
    %v1475 = vld [vmem:[%s55] sm:$0x1]
    %v1477 = vperm.slane %v1475, 0
    %v1481 = vunpack.c.l.b16 %v1472
    %v1482 = vunpack.c.l.b16 %v1473
    %v1483 = vpack.c.b16 %v1482, %v1481
    %v1486 = vsel %vm881, %v1474, 0
    %1488 = vmatpush.bf16.msra.mxu0 0
    %1489 = vmatpush.bf16.msra.mxu0 0
    %1490 = vmatpush.bf16.msra.mxu0 0
    %1491 = vmatpush.bf16.msra.mxu0 0
    %1492 = vmatpush.bf16.msra.mxu0 0
    %1493 = vmatpush.bf16.msra.mxu0 0
    %1494 = vmatpush.bf16.msra.mxu0 0
    %1495 = vmatpush.bf16.msra.mxu0 %v1483
    %1496 = vmatmul.bf16.gmra.mxu0 %v1486
    %v1497 = vpop.f32.mrf.mxu0
    %v1498 = vadd.f32 %v1477, %v1497
    %v1499 = vpop.f32.mrf.mxu0
    %1500 = vdwg.mxu0
    %v1501 = vmul.f32 %v1498, %v1498
    %v1502 = vmul.f32 %v1498, %v1501
    %v1503 = vmul.f32 %v1502, 0.044715
    %v1504 = vadd.f32 %v1498, %v1503
    %v1505 = vmul.f32 %v1504, 0.7978846
    %v1506 = vtanh.pop %v1505
    %v1507 = vadd.f32 %v1506, 1.0
    %v1508 = vmul.f32 %v1507, 0.5
    %v1509 = vmul.f32 %v1498, %v1508
    %v1510 = vld [vmem:[%s61] sm:$0x1]
    %v1511 = vld [vmem:[%s57] sm:$0xf]
    %v1512 = vld [vmem:[%s57 + $0x4] sm:$0xf]
    %v1513 = vld [vmem:[%s57 + $0x8] sm:$0xf]
    %v1514 = vld [vmem:[%s57 + $0xc] sm:$0xf]
    %v1515 = vpack.c.bf16 %v1509, %v1509
    %v1516 = vld [vmem:[%s59] sm:$0x1]
    %v1518 = vperm.slane %v1516, 0
    %v1524 = vunpack.c.l.b16 %v1511
    %v1525 = vunpack.c.l.b16 %v1512
    %v1526 = vunpack.c.l.b16 %v1513
    %v1527 = vunpack.c.l.b16 %v1514
    %v1528 = vpack.c.b16 %v1525, %v1524
    %v1529 = vpack.c.b16 %v1527, %v1526
    %v1533 = vsel %vm922, %v1515, 0
    %1535 = vmatpush.bf16.msra.mxu0 0
    %1536 = vmatpush.bf16.msra.mxu0 0
    %1537 = vmatpush.bf16.msra.mxu0 0
    %1538 = vmatpush.bf16.msra.mxu0 0
    %1539 = vmatpush.bf16.msra.mxu0 0
    %1540 = vmatpush.bf16.msra.mxu0 0
    %1541 = vmatpush.bf16.msra.mxu0 %v1529
    %1542 = vmatpush.bf16.msra.mxu0 %v1528
    %1543 = vmatmul.bf16.gmra.mxu0 %v1533
    %v1544 = vpop.f32.mrf.mxu0
    %v1545 = vadd.f32 %v1518, %v1544
    %v1546 = vpop.f32.mrf.mxu0
    %1547 = vdwg.mxu0
    %v1549 = vperm.slane %v1510, 0
    %v1551 = vmul.f32 %v1549, %v1545
    %v1552 = vadd.f32 %v1439, %v1551
    %v1553 = vld [vmem:[%s63] sm:$0x1]
    %v1554 = vld [vmem:[%s65] sm:$0x1]
    %v1555 = vsel %vm881, %v1552, 0.0
    %1556 = vadd.xlane.f32.xlu0 %v1555
    %v1557 = vpop.xlane.xlu0 %1556
    %v1558 = vmul.f32 %v1557, %v1188
    %v1559 = vsub.f32 %v1552, %v1558
    %v1560 = vmul.f32 %v1559, %v1559
    %v1561 = vsel %vm881, %v1560, 0.0
    %1562 = vadd.xlane.f32.xlu0 %v1561
    %v1563 = vpop.xlane.xlu0 %1562
    %v1564 = vmul.f32 %v1563, %v1188
    %v1565 = vadd.f32 %v1564, 1e-05
    %v1566 = vrsqrt.pop %v1565
    %v1567 = vmul.f32 %v1566, %v1565
    %v1568 = vmul.f32 %v1567, %v1566
    %v1569 = vmul.f32 0.5, %v1568
    %v1570 = vsub.f32 1.5, %v1569
    %v1571 = vmul.f32 %v1566, %v1570
    %vm1572 = vweird.f32 %v1565
    %vm1573 = vweird.f32 %v1566
    %vm1574 = vmor %vm1572, %vm1573
    %v1575 = vsel %vm1574, %v1566, %v1571
    %v1576 = vmul.f32 %v1559, %v1575
    %v1578 = vperm.slane %v1553, 0
    %v1580 = vmul.f32 %v1576, %v1578
    %v1582 = vperm.slane %v1554, 0
    %v1584 = vadd.f32 %v1580, %v1582
    %v1585 = vld [vmem:[%s67] sm:$0x3]
    %v1587 = vsel %vm222, %v1585, 0
    %1589 = vmatpush.msra.mxu0 0.0
    %1590 = vmatpush.msra.mxu0 0.0
    %1591 = vmatpush.msra.mxu0 0.0
    %1592 = vmatpush.msra.mxu0 0.0
    %1593 = vmatpush.msra.mxu0 0.0
    %1594 = vmatpush.msra.mxu0 0.0
    %1595 = vmatpush.msra.mxu0 0.0
    %1596 = vmatpush.msra.mxu0 0.0
    %1597 = vmatpush.msra.mxu0 0.0
    %1598 = vmatpush.msra.mxu0 0.0
    %1599 = vmatpush.msra.mxu0 0.0
    %1600 = vmatpush.msra.mxu0 0.0
    %1601 = vmatpush.msra.mxu0 0.0
    %1602 = vmatpush.msra.mxu0 0.0
    %1603 = vmatpush.msra.mxu0 0.0
    %1604 = vmatpush.msra.mxu0 %v1584
    %1605 = vmatmul.f32.gmra.mxu0 %v1587
    %v1606 = vpop.f32.mrf.mxu0
    %v1607 = vadd.f32 0.0, %v1606
    %1608 = vdwg.mxu0
    %v1609 = vld [vmem:[%s69] sm:$0xf]
    %v1610 = vld [vmem:[%s69 + $0x4] sm:$0xf]
    %v1611 = vpack.c.bf16 %v1607, %v1607
    %v1612 = vld [vmem:[%s71] sm:$0x1]
    %v1614 = vperm.slane %v1612, 0
    %v1618 = vunpack.c.l.b16 %v1609
    %v1619 = vunpack.c.l.b16 %v1610
    %v1620 = vpack.c.b16 %v1619, %v1618
    %v1623 = vsel %vm881, %v1611, 0
    %1625 = vmatpush.bf16.msra.mxu0 0
    %1626 = vmatpush.bf16.msra.mxu0 0
    %1627 = vmatpush.bf16.msra.mxu0 0
    %1628 = vmatpush.bf16.msra.mxu0 0
    %1629 = vmatpush.bf16.msra.mxu0 0
    %1630 = vmatpush.bf16.msra.mxu0 0
    %1631 = vmatpush.bf16.msra.mxu0 0
    %1632 = vmatpush.bf16.msra.mxu0 %v1620
    %1633 = vmatmul.bf16.gmra.mxu0 %v1623
    %v1634 = vpop.f32.mrf.mxu0
    %v1635 = vadd.f32 %v1614, %v1634
    %v1636 = vpop.f32.mrf.mxu0
    %1637 = vdwg.mxu0
    %vm1638 = vcmask 58368
    %1639 = vst.msk [vmem:[#allocation2] sm:$0x3] %vm1638, %v1635
    // Predicated region
    $region146: #{tinyvit_forward.1} parent=1 // pred_check
      _
    $region147: #{tinyvit_forward.1} parent=1 // pred_check_branch
      %1641 = sbr.rel (0) target = $region149
    $region148: #{tinyvit_forward.1} parent=1 // pred_region
      %1643 = vsyncadd [#allocation3], 0
      %s1645 = sshll.u32 [#allocation2], 4
      %s1646 = int_to_ptr.vmem [resolvable:$true] %s1645
      %s1647 = sshll.u32 %s73, 4
      %s1648 = int_to_ptr.hbm [resolvable:$true] %s1647
      %1650 = dma.vmem_to_hbm [thread:$0]  %s1646, 32, %s1648, [#allocation3]
    $region149: #{tinyvit_forward.1} parent=1 // pred_fallthru
      _
    // Predicated region
    $region150: #{tinyvit_forward.1} parent=1 // pred_check
      _
    $region151: #{tinyvit_forward.1} parent=1 // pred_check_branch
      %1652 = sbr.rel (0) target = $region153
    $region152: #{tinyvit_forward.1} parent=1 // pred_region
      %1654 = dma.done [#allocation3], 32
    $region153: #{tinyvit_forward.1} parent=1 // pred_fallthru
      _
    %1655 = vsyncpa [#allocation3], 1

</llo_original>
